<compile_context>
chip_gen: v6e
topology: v6e:2x2x1
jax: 0.10.0
libtpu: 0.0.40
codegen_flags: <defaults>
</compile_context>

<pallas_src>
import jax
import jax.numpy as jnp
from jax.experimental import pallas as pl
from jax.experimental.pallas import tpu as pltpu

EPS = 1e-5  # BatchNorm1d default eps

_PARAM_KEYS = ("w0", "g0", "be0", "w1", "g1", "be1", "w2", "g2", "be2")


def _round_up_128(n):
    return ((n + 127) // 128) * 128


def _var_encoder_kernel(
    x_ref,
    w0_ref, g0_ref, be0_ref,
    w1_ref, g1_ref, be1_ref,
    w2_ref, g2_ref, be2_ref,
    out_ref,
):
    # x_ref block is (G, B, F): G independent batches per grid step.
    G, B, _ = x_ref.shape
    out_size = out_ref.shape[-1]
    x = x_ref[...].astype(jnp.float32)

    def linear_bn(h, w_ref, g_ref, be_ref):
        # h: (G, B, K) f32.  Merge (G, B) -> G*B rows for one big MXU matmul
        # (layout-free when B is a multiple of 8); operands cast to the stored
        # weight dtype (bf16 in production), accumulation in f32.
        K = h.shape[-1]
        Hc = w_ref.shape[-1]
        y = jnp.dot(h.reshape(G * B, K).astype(w_ref.dtype), w_ref[...],
                    preferred_element_type=jnp.float32)
        y = y.reshape(G, B, Hc)
        # Training-mode BN with per-independent-batch statistics (axis=1).
        # Shifted single pass: subtract row 0 of each column first so the
        # E[y^2] - E[y]^2 combination does not catastrophically cancel, then
        # fold normalize + affine into a single scale/shift.  (Linear bias is
        # dropped: the mean subtraction cancels it exactly.)
        # At production sizes (G*B x Hc beyond ~32 f32 vregs) split Hc into
        # 512-lane chunks here to bound live ranges.
        c = y[:, :1, :]                                     # (G, 1, Hc)
        ys = y - c
        m_s = jnp.mean(ys, axis=1, keepdims=True)           # (G, 1, Hc)
        var = jnp.mean(ys * ys, axis=1, keepdims=True) - m_s * m_s
        mean = m_s + c
        scale = g_ref[...] * jax.lax.rsqrt(var + EPS)       # f32 elementwise math
        shift = be_ref[...] - mean * scale
        return y * scale + shift

    h = jnp.maximum(linear_bn(x, w0_ref, g0_ref, be0_ref), 0.0)   # Linear-BN-ReLU
    h = jnp.maximum(linear_bn(h, w1_ref, g1_ref, be1_ref), 0.0)   # Linear-BN-ReLU
    out = jnp.tanh(linear_bn(h, w2_ref, g2_ref, be2_ref))         # Linear-BN-Tanh

    # Store only the real output columns (padded lanes are exactly zero);
    # avoids a separate wrapper-side slice pass over the output array.
    out_ref[...] = out[:, :, :out_size].astype(out_ref.dtype)


def prepare_params(params, matmul_dtype=jnp.bfloat16):
    """One-time parameter prep.

    Zero-pads hidden/output feature axes to a multiple of 128 lanes (gamma and
    beta padded with zeros so padded columns stay exactly 0) and casts the
    matmul weights to the MXU input dtype.  Done once, outside the per-call
    forward path.  Input features are NOT padded (that would need a per-call
    pad of x itself).
    """
    F, H = params["w0"].shape
    O = params["w2"].shape[1]
    Hp, Op = _round_up_128(H), _round_up_128(O)

    def pad_w(w, rows, cols):
        r, c = w.shape
        return jnp.pad(w, ((0, rows - r), (0, cols - c))).astype(matmul_dtype)

    def pad_v(v, cols):  # gamma / beta stay f32
        return jnp.pad(v, ((0, 0), (0, cols - v.shape[1])))

    return {
        "w0": pad_w(params["w0"], F, Hp),
        "g0": pad_v(params["g0"], Hp), "be0": pad_v(params["be0"], Hp),
        "w1": pad_w(params["w1"], Hp, Hp),
        "g1": pad_v(params["g1"], Hp), "be1": pad_v(params["be1"], Hp),
        "w2": pad_w(params["w2"], Hp, Op),
        "g2": pad_v(params["g2"], Op), "be2": pad_v(params["be2"], Op),
        "out_size": O,
    }


def var_encoder_forward(x, prepped, *, target_grid_steps=2):
    """Forward pass.

    x: [B, input_size]     -> returns [B, output_size]
       [N, B, input_size]  -> returns [N, B, output_size]
       (N independent batches; BN statistics are computed per batch, exactly as
        N separate calls to the PyTorch module.)
    target_grid_steps: number of grid steps the N batches are split over.
       Keep >= 2 on v7x so both TensorCores are used; 1 minimizes step overhead
       on single-TC chips (v5e/v6e).
    """
    squeeze = x.ndim == 2
    if squeeze:
        x = x[None]
    N, B, F = x.shape
    out_size = prepped["out_size"]

    steps = target_grid_steps if (target_grid_steps > 1 and N % target_grid_steps == 0) else 1
    G = N // steps

    weights = tuple(prepped[k] for k in _PARAM_KEYS)

    # G independent batches per grid step.
    x_spec = pl.BlockSpec((G, B, F), lambda i: (i, 0, 0))
    # Whole-array weight blocks with a constant block index: DMA'd once, then
    # VMEM-resident across all grid steps (lambdas capture nothing).  At
    # production hidden sizes on v7x (64 MiB VMEM) keep them bf16 and consider
    # pipeline_mode=pl.Buffered(1) to drop the redundant second buffer.
    weight_specs = [pl.BlockSpec(w.shape, lambda i: (0, 0)) for w in weights]
    # Exact output width: no wrapper-side slice afterwards.
    out_spec = pl.BlockSpec((G, B, out_size), lambda i: (i, 0, 0))

    out = pl.pallas_call(
        _var_encoder_kernel,
        out_shape=jax.ShapeDtypeStruct((N, B, out_size), jnp.float32),
        grid=(steps,),
        in_specs=[x_spec] + weight_specs,
        out_specs=out_spec,
        compiler_params=pltpu.CompilerParams(
            # Each grid step handles independent batches (independent BN stats),
            # so the axis is safely "parallel" -> megacore split on v7x.
            dimension_semantics=("parallel",),
            vmem_limit_bytes=32 * 1024 * 1024,
        ),
    )(x, *weights)

    return out[0] if squeeze else out


def init_params(key, input_size, output_size, hidden_size):
    """Deterministic synthetic parameters matching nn.Linear/BatchNorm1d shapes."""
    ks = jax.random.split(key, 6)

    def linear(kw, kb, fan_in, fan_out):
        bound = 1.0 / jnp.sqrt(fan_in)
        # stored pre-transposed: [in, out]
        w = jax.random.uniform(kw, (fan_in, fan_out), jnp.float32, -bound, bound)
        b = jax.random.uniform(kb, (1, fan_out), jnp.float32, -bound, bound)
        return w, b

    w0, b0 = linear(ks[0], ks[1], input_size, hidden_size)
    w1, b1 = linear(ks[2], ks[3], hidden_size, hidden_size)
    w2, b2 = linear(ks[4], ks[5], hidden_size, output_size)

    return {
        "w0": w0, "b0": b0,
        "g0": jnp.ones((1, hidden_size), jnp.float32),
        "be0": jnp.zeros((1, hidden_size), jnp.float32),
        "w1": w1, "b1": b1,
        "g1": jnp.ones((1, hidden_size), jnp.float32),
        "be1": jnp.zeros((1, hidden_size), jnp.float32),
        "w2": w2, "b2": b2,
        "g2": jnp.ones((1, output_size), jnp.float32),
        "be2": jnp.zeros((1, output_size), jnp.float32),
    }


def var_encoder_reference(x, p):
    """Pure-JAX reference (includes the Linear biases, two-pass BN stats, f32)."""
    def bn(y, g, be):
        mean = jnp.mean(y, axis=0, keepdims=True)
        var = jnp.mean((y - mean) ** 2, axis=0, keepdims=True)
        return (y - mean) / jnp.sqrt(var + EPS) * g + be

    h = jnp.maximum(bn(x @ p["w0"] + p["b0"], p["g0"], p["be0"]), 0.0)
    h = jnp.maximum(bn(h @ p["w1"] + p["b1"], p["g1"], p["be1"]), 0.0)
    return jnp.tanh(bn(h @ p["w2"] + p["b2"], p["g2"], p["be2"]))


if __name__ == "__main__":
    key = jax.random.PRNGKey(0)
    k_x, k_p = jax.random.split(key)

    num_batches = 8    # N independent encoder invocations fused into one pallas_call
    batch = 8
    input_size = 16
    hidden_size = 32
    output_size = 8

    params = init_params(k_p, input_size, output_size, hidden_size)
    x = jax.random.normal(k_x, (num_batches, batch, input_size), jnp.float32)

    ref = jax.vmap(lambda xb: var_encoder_reference(xb, params))(x)

    # 1) f32-matmul path: tight numerical check of the fused kernel math.
    prepped_f32 = prepare_params(params, matmul_dtype=jnp.float32)
    out_f32 = jax.block_until_ready(var_encoder_forward(x, prepped_f32))
    assert out_f32.shape == (num_batches, batch, output_size)
    assert jnp.allclose(out_f32, ref, atol=1e-5, rtol=1e-5), "f32 path mismatch vs reference"

    # 2) bf16-matmul path (production config: bf16 MXU operands, f32 BN math).
    prepped_bf16 = prepare_params(params, matmul_dtype=jnp.bfloat16)
    out_bf16 = jax.block_until_ready(var_encoder_forward(x, prepped_bf16))
    assert out_bf16.shape == (num_batches, batch, output_size)
    assert jnp.allclose(out_bf16, ref, atol=5e-2, rtol=0.0), "bf16 path mismatch vs reference"

    # 3) Original 2-D module signature still works (single batch, grid=(1,)).
    out_single = jax.block_until_ready(var_encoder_forward(x[0], prepped_f32))
    assert out_single.shape == (batch, output_size)
    assert jnp.allclose(out_single, ref[0], atol=1e-5, rtol=1e-5), "2-D path mismatch"

    print("KERNEL_OK")
</pallas_src>

<mosaic_0001>
module attributes {stable_mosaic.version = 11 : i64} {
  func.func @_var_encoder_kernel(%arg0: i32, %arg1: memref<4x8x16xf32, #tpu.memory_space<vmem>>, %arg2: memref<16x128xf32, #tpu.memory_space<vmem>>, %arg3: memref<1x128xf32, #tpu.memory_space<vmem>>, %arg4: memref<1x128xf32, #tpu.memory_space<vmem>>, %arg5: memref<128x128xf32, #tpu.memory_space<vmem>>, %arg6: memref<1x128xf32, #tpu.memory_space<vmem>>, %arg7: memref<1x128xf32, #tpu.memory_space<vmem>>, %arg8: memref<128x128xf32, #tpu.memory_space<vmem>>, %arg9: memref<1x128xf32, #tpu.memory_space<vmem>>, %arg10: memref<1x128xf32, #tpu.memory_space<vmem>>, %arg11: memref<4x8x8xf32, #tpu.memory_space<vmem>>) attributes {dimension_semantics = [#tpu.dimension_semantics<parallel>], iteration_bounds = array<i64: 2>, scalar_prefetch = 0 : i64, scratch_operands = 0 : i64, tpu.core_type = #tpu.core_type<tc>, window_params = [{transform_indices = @transform_0, window_bounds = array<i64: 4, 8, 16>}, {pipeline_mode = #tpu.pipeline_mode<synchronous>, transform_indices = @transform_1, window_bounds = array<i64: 16, 128>}, {pipeline_mode = #tpu.pipeline_mode<synchronous>, transform_indices = @transform_2, window_bounds = array<i64: 1, 128>}, {pipeline_mode = #tpu.pipeline_mode<synchronous>, transform_indices = @transform_3, window_bounds = array<i64: 1, 128>}, {pipeline_mode = #tpu.pipeline_mode<synchronous>, transform_indices = @transform_4, window_bounds = array<i64: 128, 128>}, {pipeline_mode = #tpu.pipeline_mode<synchronous>, transform_indices = @transform_5, window_bounds = array<i64: 1, 128>}, {pipeline_mode = #tpu.pipeline_mode<synchronous>, transform_indices = @transform_6, window_bounds = array<i64: 1, 128>}, {pipeline_mode = #tpu.pipeline_mode<synchronous>, transform_indices = @transform_7, window_bounds = array<i64: 128, 128>}, {pipeline_mode = #tpu.pipeline_mode<synchronous>, transform_indices = @transform_8, window_bounds = array<i64: 1, 128>}, {pipeline_mode = #tpu.pipeline_mode<synchronous>, transform_indices = @transform_9, window_bounds = array<i64: 1, 128>}, {transform_indices = @transform_10, window_bounds = array<i64: 4, 8, 8>}]} {
    %c0 = arith.constant 0 : index
    %c0_0 = arith.constant 0 : index
    %c0_1 = arith.constant 0 : index
    %0 = vector.load %arg1[%c0, %c0_0, %c0_1] : memref<4x8x16xf32, #tpu.memory_space<vmem>>, vector<4x8x16xf32>
    %1 = vector.shape_cast %0 : vector<4x8x16xf32> to vector<32x16xf32>
    %c0_2 = arith.constant 0 : index
    %c0_3 = arith.constant 0 : index
    %2 = vector.load %arg2[%c0_2, %c0_3] : memref<16x128xf32, #tpu.memory_space<vmem>>, vector<16x128xf32>
    %cst = arith.constant dense<0.000000e+00> : vector<32x128xf32>
    %3 = tpu.matmul %1, %2, %cst {dimension_numbers = #tpu.dot_dimension_numbers<[1], [0], [0], [1], [0, 0, 1, 1], [], []>} : vector<32x16xf32>, vector<16x128xf32>, vector<32x128xf32> -> vector<32x128xf32>
    %4 = vector.shape_cast %3 : vector<32x128xf32> to vector<4x8x128xf32>
    %5 = vector.extract_strided_slice %4 {offsets = [0, 0, 0], sizes = [4, 1, 128], strides = [1, 1, 1]} : vector<4x8x128xf32> to vector<4x1x128xf32>
    %6 = vector.broadcast %5 : vector<4x1x128xf32> to vector<4x8x128xf32>
    %7 = arith.subf %4, %6 : vector<4x8x128xf32>
    %cst_4 = arith.constant dense<0.000000e+00> : vector<4x128xf32>
    %8 = vector.multi_reduction <add>, %7, %cst_4 [1] : vector<4x8x128xf32> to vector<4x128xf32>
    %9 = vector.shape_cast %8 : vector<4x128xf32> to vector<4x1x128xf32>
    %cst_5 = arith.constant 8.000000e+00 : f32
    %10 = vector.broadcast %cst_5 : f32 to vector<4x1x128xf32>
    %11 = arith.divf %9, %10 : vector<4x1x128xf32>
    %12 = arith.mulf %7, %7 : vector<4x8x128xf32>
    %cst_6 = arith.constant dense<0.000000e+00> : vector<4x128xf32>
    %13 = vector.multi_reduction <add>, %12, %cst_6 [1] : vector<4x8x128xf32> to vector<4x128xf32>
    %14 = vector.shape_cast %13 : vector<4x128xf32> to vector<4x1x128xf32>
    %cst_7 = arith.constant 8.000000e+00 : f32
    %15 = vector.broadcast %cst_7 : f32 to vector<4x1x128xf32>
    %16 = arith.divf %14, %15 : vector<4x1x128xf32>
    %17 = arith.mulf %11, %11 : vector<4x1x128xf32>
    %18 = arith.subf %16, %17 : vector<4x1x128xf32>
    %19 = arith.addf %11, %5 : vector<4x1x128xf32>
    %c0_8 = arith.constant 0 : index
    %c0_9 = arith.constant 0 : index
    %20 = vector.load %arg3[%c0_8, %c0_9] : memref<1x128xf32, #tpu.memory_space<vmem>>, vector<1x128xf32>
    %cst_10 = arith.constant 9.99999974E-6 : f32
    %21 = vector.broadcast %cst_10 : f32 to vector<4x1x128xf32>
    %22 = arith.addf %18, %21 : vector<4x1x128xf32>
    %23 = math.rsqrt %22 : vector<4x1x128xf32>
    %24 = vector.shape_cast %20 : vector<1x128xf32> to vector<1x1x128xf32>
    %25 = vector.broadcast %24 : vector<1x1x128xf32> to vector<4x1x128xf32>
    %26 = arith.mulf %25, %23 : vector<4x1x128xf32>
    %c0_11 = arith.constant 0 : index
    %c0_12 = arith.constant 0 : index
    %27 = vector.load %arg4[%c0_11, %c0_12] : memref<1x128xf32, #tpu.memory_space<vmem>>, vector<1x128xf32>
    %28 = arith.mulf %19, %26 : vector<4x1x128xf32>
    %29 = vector.shape_cast %27 : vector<1x128xf32> to vector<1x1x128xf32>
    %30 = vector.broadcast %29 : vector<1x1x128xf32> to vector<4x1x128xf32>
    %31 = arith.subf %30, %28 : vector<4x1x128xf32>
    %32 = vector.broadcast %26 : vector<4x1x128xf32> to vector<4x8x128xf32>
    %33 = arith.mulf %4, %32 : vector<4x8x128xf32>
    %34 = vector.broadcast %31 : vector<4x1x128xf32> to vector<4x8x128xf32>
    %35 = arith.addf %33, %34 : vector<4x8x128xf32>
    %cst_13 = arith.constant 0.000000e+00 : f32
    %36 = vector.broadcast %cst_13 : f32 to vector<4x8x128xf32>
    %37 = arith.maximumf %35, %36 : vector<4x8x128xf32>
    %38 = vector.shape_cast %37 : vector<4x8x128xf32> to vector<32x128xf32>
    %c0_14 = arith.constant 0 : index
    %c0_15 = arith.constant 0 : index
    %39 = vector.load %arg5[%c0_14, %c0_15] : memref<128x128xf32, #tpu.memory_space<vmem>>, vector<128x128xf32>
    %cst_16 = arith.constant dense<0.000000e+00> : vector<32x128xf32>
    %40 = tpu.matmul %38, %39, %cst_16 {dimension_numbers = #tpu.dot_dimension_numbers<[1], [0], [0], [1], [0, 0, 1, 1], [], []>} : vector<32x128xf32>, vector<128x128xf32>, vector<32x128xf32> -> vector<32x128xf32>
    %41 = vector.shape_cast %40 : vector<32x128xf32> to vector<4x8x128xf32>
    %42 = vector.extract_strided_slice %41 {offsets = [0, 0, 0], sizes = [4, 1, 128], strides = [1, 1, 1]} : vector<4x8x128xf32> to vector<4x1x128xf32>
    %43 = vector.broadcast %42 : vector<4x1x128xf32> to vector<4x8x128xf32>
    %44 = arith.subf %41, %43 : vector<4x8x128xf32>
    %cst_17 = arith.constant dense<0.000000e+00> : vector<4x128xf32>
    %45 = vector.multi_reduction <add>, %44, %cst_17 [1] : vector<4x8x128xf32> to vector<4x128xf32>
    %46 = vector.shape_cast %45 : vector<4x128xf32> to vector<4x1x128xf32>
    %cst_18 = arith.constant 8.000000e+00 : f32
    %47 = vector.broadcast %cst_18 : f32 to vector<4x1x128xf32>
    %48 = arith.divf %46, %47 : vector<4x1x128xf32>
    %49 = arith.mulf %44, %44 : vector<4x8x128xf32>
    %cst_19 = arith.constant dense<0.000000e+00> : vector<4x128xf32>
    %50 = vector.multi_reduction <add>, %49, %cst_19 [1] : vector<4x8x128xf32> to vector<4x128xf32>
    %51 = vector.shape_cast %50 : vector<4x128xf32> to vector<4x1x128xf32>
    %cst_20 = arith.constant 8.000000e+00 : f32
    %52 = vector.broadcast %cst_20 : f32 to vector<4x1x128xf32>
    %53 = arith.divf %51, %52 : vector<4x1x128xf32>
    %54 = arith.mulf %48, %48 : vector<4x1x128xf32>
    %55 = arith.subf %53, %54 : vector<4x1x128xf32>
    %56 = arith.addf %48, %42 : vector<4x1x128xf32>
    %c0_21 = arith.constant 0 : index
    %c0_22 = arith.constant 0 : index
    %57 = vector.load %arg6[%c0_21, %c0_22] : memref<1x128xf32, #tpu.memory_space<vmem>>, vector<1x128xf32>
    %cst_23 = arith.constant 9.99999974E-6 : f32
    %58 = vector.broadcast %cst_23 : f32 to vector<4x1x128xf32>
    %59 = arith.addf %55, %58 : vector<4x1x128xf32>
    %60 = math.rsqrt %59 : vector<4x1x128xf32>
    %61 = vector.shape_cast %57 : vector<1x128xf32> to vector<1x1x128xf32>
    %62 = vector.broadcast %61 : vector<1x1x128xf32> to vector<4x1x128xf32>
    %63 = arith.mulf %62, %60 : vector<4x1x128xf32>
    %c0_24 = arith.constant 0 : index
    %c0_25 = arith.constant 0 : index
    %64 = vector.load %arg7[%c0_24, %c0_25] : memref<1x128xf32, #tpu.memory_space<vmem>>, vector<1x128xf32>
    %65 = arith.mulf %56, %63 : vector<4x1x128xf32>
    %66 = vector.shape_cast %64 : vector<1x128xf32> to vector<1x1x128xf32>
    %67 = vector.broadcast %66 : vector<1x1x128xf32> to vector<4x1x128xf32>
    %68 = arith.subf %67, %65 : vector<4x1x128xf32>
    %69 = vector.broadcast %63 : vector<4x1x128xf32> to vector<4x8x128xf32>
    %70 = arith.mulf %41, %69 : vector<4x8x128xf32>
    %71 = vector.broadcast %68 : vector<4x1x128xf32> to vector<4x8x128xf32>
    %72 = arith.addf %70, %71 : vector<4x8x128xf32>
    %cst_26 = arith.constant 0.000000e+00 : f32
    %73 = vector.broadcast %cst_26 : f32 to vector<4x8x128xf32>
    %74 = arith.maximumf %72, %73 : vector<4x8x128xf32>
    %75 = vector.shape_cast %74 : vector<4x8x128xf32> to vector<32x128xf32>
    %c0_27 = arith.constant 0 : index
    %c0_28 = arith.constant 0 : index
    %76 = vector.load %arg8[%c0_27, %c0_28] : memref<128x128xf32, #tpu.memory_space<vmem>>, vector<128x128xf32>
    %cst_29 = arith.constant dense<0.000000e+00> : vector<32x128xf32>
    %77 = tpu.matmul %75, %76, %cst_29 {dimension_numbers = #tpu.dot_dimension_numbers<[1], [0], [0], [1], [0, 0, 1, 1], [], []>} : vector<32x128xf32>, vector<128x128xf32>, vector<32x128xf32> -> vector<32x128xf32>
    %78 = vector.shape_cast %77 : vector<32x128xf32> to vector<4x8x128xf32>
    %79 = vector.extract_strided_slice %78 {offsets = [0, 0, 0], sizes = [4, 1, 128], strides = [1, 1, 1]} : vector<4x8x128xf32> to vector<4x1x128xf32>
    %80 = vector.broadcast %79 : vector<4x1x128xf32> to vector<4x8x128xf32>
    %81 = arith.subf %78, %80 : vector<4x8x128xf32>
    %cst_30 = arith.constant dense<0.000000e+00> : vector<4x128xf32>
    %82 = vector.multi_reduction <add>, %81, %cst_30 [1] : vector<4x8x128xf32> to vector<4x128xf32>
    %83 = vector.shape_cast %82 : vector<4x128xf32> to vector<4x1x128xf32>
    %cst_31 = arith.constant 8.000000e+00 : f32
    %84 = vector.broadcast %cst_31 : f32 to vector<4x1x128xf32>
    %85 = arith.divf %83, %84 : vector<4x1x128xf32>
    %86 = arith.mulf %81, %81 : vector<4x8x128xf32>
    %cst_32 = arith.constant dense<0.000000e+00> : vector<4x128xf32>
    %87 = vector.multi_reduction <add>, %86, %cst_32 [1] : vector<4x8x128xf32> to vector<4x128xf32>
    %88 = vector.shape_cast %87 : vector<4x128xf32> to vector<4x1x128xf32>
    %cst_33 = arith.constant 8.000000e+00 : f32
    %89 = vector.broadcast %cst_33 : f32 to vector<4x1x128xf32>
    %90 = arith.divf %88, %89 : vector<4x1x128xf32>
    %91 = arith.mulf %85, %85 : vector<4x1x128xf32>
    %92 = arith.subf %90, %91 : vector<4x1x128xf32>
    %93 = arith.addf %85, %79 : vector<4x1x128xf32>
    %c0_34 = arith.constant 0 : index
    %c0_35 = arith.constant 0 : index
    %94 = vector.load %arg9[%c0_34, %c0_35] : memref<1x128xf32, #tpu.memory_space<vmem>>, vector<1x128xf32>
    %cst_36 = arith.constant 9.99999974E-6 : f32
    %95 = vector.broadcast %cst_36 : f32 to vector<4x1x128xf32>
    %96 = arith.addf %92, %95 : vector<4x1x128xf32>
    %97 = math.rsqrt %96 : vector<4x1x128xf32>
    %98 = vector.shape_cast %94 : vector<1x128xf32> to vector<1x1x128xf32>
    %99 = vector.broadcast %98 : vector<1x1x128xf32> to vector<4x1x128xf32>
    %100 = arith.mulf %99, %97 : vector<4x1x128xf32>
    %c0_37 = arith.constant 0 : index
    %c0_38 = arith.constant 0 : index
    %101 = vector.load %arg10[%c0_37, %c0_38] : memref<1x128xf32, #tpu.memory_space<vmem>>, vector<1x128xf32>
    %102 = arith.mulf %93, %100 : vector<4x1x128xf32>
    %103 = vector.shape_cast %101 : vector<1x128xf32> to vector<1x1x128xf32>
    %104 = vector.broadcast %103 : vector<1x1x128xf32> to vector<4x1x128xf32>
    %105 = arith.subf %104, %102 : vector<4x1x128xf32>
    %106 = vector.broadcast %100 : vector<4x1x128xf32> to vector<4x8x128xf32>
    %107 = arith.mulf %78, %106 : vector<4x8x128xf32>
    %108 = vector.broadcast %105 : vector<4x1x128xf32> to vector<4x8x128xf32>
    %109 = arith.addf %107, %108 : vector<4x8x128xf32>
    %110 = math.tanh %109 : vector<4x8x128xf32>
    %111 = vector.extract_strided_slice %110 {offsets = [0, 0, 0], sizes = [4, 8, 8], strides = [1, 1, 1]} : vector<4x8x128xf32> to vector<4x8x8xf32>
    %c0_39 = arith.constant 0 : index
    %c0_40 = arith.constant 0 : index
    %c0_41 = arith.constant 0 : index
    %112 = vector.load %arg11[%c0_39, %c0_40, %c0_41] : memref<4x8x8xf32, #tpu.memory_space<vmem>>, vector<4x8x8xf32>
    tpu.vector_store %arg11[%c0_39, %c0_40, %c0_41], %111 {strides = array<i32>} : memref<4x8x8xf32, #tpu.memory_space<vmem>>, vector<4x8x8xf32>,
    return
  }
  func.func @transform_0(%arg0: i32) -> (i32, i32, i32) {
    %c0_i32 = arith.constant 0 : i32
    %c0_i32_0 = arith.constant 0 : i32
    %c0_i32_1 = arith.constant 0 : i32
    return %arg0, %c0_i32, %c0_i32_0 : i32, i32, i32
  }
  func.func @transform_1(%arg0: i32) -> (i32, i32) {
    %c0_i32 = arith.constant 0 : i32
    %c0_i32_0 = arith.constant 0 : i32
    %c0_i32_1 = arith.constant 0 : i32
    return %c0_i32, %c0_i32_0 : i32, i32
  }
  func.func @transform_2(%arg0: i32) -> (i32, i32) {
    %c0_i32 = arith.constant 0 : i32
    %c0_i32_0 = arith.constant 0 : i32
    %c0_i32_1 = arith.constant 0 : i32
    return %c0_i32, %c0_i32_0 : i32, i32
  }
  func.func @transform_3(%arg0: i32) -> (i32, i32) {
    %c0_i32 = arith.constant 0 : i32
    %c0_i32_0 = arith.constant 0 : i32
    %c0_i32_1 = arith.constant 0 : i32
    return %c0_i32, %c0_i32_0 : i32, i32
  }
  func.func @transform_4(%arg0: i32) -> (i32, i32) {
    %c0_i32 = arith.constant 0 : i32
    %c0_i32_0 = arith.constant 0 : i32
    %c0_i32_1 = arith.constant 0 : i32
    return %c0_i32, %c0_i32_0 : i32, i32
  }
  func.func @transform_5(%arg0: i32) -> (i32, i32) {
    %c0_i32 = arith.constant 0 : i32
    %c0_i32_0 = arith.constant 0 : i32
    %c0_i32_1 = arith.constant 0 : i32
    return %c0_i32, %c0_i32_0 : i32, i32
  }
  func.func @transform_6(%arg0: i32) -> (i32, i32) {
    %c0_i32 = arith.constant 0 : i32
    %c0_i32_0 = arith.constant 0 : i32
    %c0_i32_1 = arith.constant 0 : i32
    return %c0_i32, %c0_i32_0 : i32, i32
  }
  func.func @transform_7(%arg0: i32) -> (i32, i32) {
    %c0_i32 = arith.constant 0 : i32
    %c0_i32_0 = arith.constant 0 : i32
    %c0_i32_1 = arith.constant 0 : i32
    return %c0_i32, %c0_i32_0 : i32, i32
  }
  func.func @transform_8(%arg0: i32) -> (i32, i32) {
    %c0_i32 = arith.constant 0 : i32
    %c0_i32_0 = arith.constant 0 : i32
    %c0_i32_1 = arith.constant 0 : i32
    return %c0_i32, %c0_i32_0 : i32, i32
  }
  func.func @transform_9(%arg0: i32) -> (i32, i32) {
    %c0_i32 = arith.constant 0 : i32
    %c0_i32_0 = arith.constant 0 : i32
    %c0_i32_1 = arith.constant 0 : i32
    return %c0_i32, %c0_i32_0 : i32, i32
  }
  func.func @transform_10(%arg0: i32) -> (i32, i32, i32) {
    %c0_i32 = arith.constant 0 : i32
    %c0_i32_0 = arith.constant 0 : i32
    %c0_i32_1 = arith.constant 0 : i32
    return %arg0, %c0_i32, %c0_i32_0 : i32, i32, i32
  }
}

</mosaic_0001>

<llo_original>
// kernel: tpu_custom_call.1
$region0: #{tpu_custom_call.1}
  #allocation0 [shape = 'u32[]', space=smem, size = 0x4, offset = 0x4, fixed_abs, tag = 'smem constant byte address 0x4 - core index']
  #allocation1 [shape = 'u32[144,128]{1,0:T(1,128)}', space=vmem, size = 0x12000, scoped, tag = 'internal scratch']
  %s0 = inlined_call_operand.hbm [shape: f32[8,8,16], index: 0, kind: input, shape index: {}]
  %s1 = inlined_call_operand.hbm [shape: f32[16,128], index: 1, kind: input, shape index: {}]
  %s2 = inlined_call_operand.vmem [shape: f32[1,128], index: 2, kind: input, shape index: {}]
  %s3 = inlined_call_operand.vmem [shape: f32[1,128], index: 3, kind: input, shape index: {}]
  %s4 = inlined_call_operand.hbm [shape: f32[128,128], index: 4, kind: input, shape index: {}]
  %s5 = inlined_call_operand.vmem [shape: f32[1,128], index: 5, kind: input, shape index: {}]
  %s6 = inlined_call_operand.vmem [shape: f32[1,128], index: 6, kind: input, shape index: {}]
  %s7 = inlined_call_operand.hbm [shape: f32[128,128], index: 7, kind: input, shape index: {}]
  %s8 = inlined_call_operand.vmem [shape: f32[1,128], index: 8, kind: input, shape index: {}]
  %s9 = inlined_call_operand.vmem [shape: f32[1,128], index: 9, kind: input, shape index: {}]
  %s10 = inlined_call_operand.hbm [shape: f32[8,8,8], index: 10, kind: output, shape index: {}]
  %s11 = sld [smem:[#allocation0]]
  $region89: #{tpu_custom_call.1} parent=0
    _
  %s13 = ssub.s32 1, %s11
  %s14 = scalar_select 0, %s13, %s11
  $region1: #{tpu_custom_call.1} parent=0
    #allocation2 [shape = 'u8[32768]{0}', space=vmem, size = 0x8000, scoped, tag = 'input window, operand 0']
    #allocation3 [shape = 's32[2]{0}', space=sflag, size = 0x8, scoped, tag = 'scoped memory for tpu_custom_call.1']
    #allocation4 [shape = 's32[2]{0}', space=sflag, size = 0x8, scoped, tag = 'scoped memory for tpu_custom_call.1']
    #allocation5 [shape = 'u8[8192]{0}', space=vmem, size = 0x2000, scoped, tag = 'input window, operand 1, single buffered']
    #allocation6 [shape = 's32[1]{0}', space=sflag, size = 0x4, scoped, tag = 'scoped memory for tpu_custom_call.1']
    #allocation7 [shape = 'u8[65536]{0}', space=vmem, size = 0x10000, scoped, tag = 'input window, operand 4, single buffered']
    #allocation8 [shape = 'u8[65536]{0}', space=vmem, size = 0x10000, scoped, tag = 'input window, operand 7, single buffered']
    #allocation9 [shape = 's32[1]{0}', space=sflag, size = 0x4, scoped, tag = 'scoped memory for tpu_custom_call.1']
    #allocation10 [shape = 'u8[32768]{0}', space=vmem, size = 0x8000, scoped, tag = 'output window, operand 0']
    %15 = vsyncpa [#allocation3], 0
    %s16 = scalar_lea.sflag [#allocation3], 1
    %17 = vsyncpa %s16, 0
    %18 = vsyncpa [#allocation6], 0
    %19 = vsyncpa [#allocation9], 0
    %20 = vsyncpa [#allocation4], 0
    %s21 = scalar_lea.sflag [#allocation4], 1
    %22 = vsyncpa %s21, 0
    loop: start=0, step=1, limit=4
    $region2: #{tpu_custom_call.1} parent=1 // loop_pre_header
      _
    $region3: #{tpu_custom_call.1} parent=1 // loop_header
      %s24 = sphi 0, %s28
      %p25 = scmp.ge.s32.totalorder %s24, 4
      %s34 = sphi 0, %s36
      %s37 = sphi 0, %s34
      %s38 = sphi 0, %s37
      %s54 = sphi 0, %s38
      %s58 = sphi 0, %s58
      %s60 = sphi 0, %s58
      %s61 = sphi 0, %s60
      %s75 = sphi 0, %s61
      %s79 = sphi 0, %s79
      %s81 = sphi 0, %s79
      %s82 = sphi 0, %s81
      %s96 = sphi 0, %s82
      %s100 = sphi 0, %s100
      %s102 = sphi 0, %s100
      %s103 = sphi 0, %s102
      %s117 = sphi 0, %s103
      %s121 = sphi 0, %s121
      %s123 = sphi 0, %s121
      %s124 = sphi 0, %s123
      %s138 = sphi 0, %s124
      %s142 = sphi 0, %s142
      %s144 = sphi 0, %s142
      %s145 = sphi 0, %s144
      %s159 = sphi 0, %s145
      %s163 = sphi 0, %s163
      %s165 = sphi 0, %s163
      %s166 = sphi 0, %s165
      %s180 = sphi 0, %s166
      %s184 = sphi 0, %s184
      %s186 = sphi 0, %s184
      %s187 = sphi 0, %s186
      %s201 = sphi 0, %s187
      %s205 = sphi 0, %s205
      %s207 = sphi 0, %s205
      %s208 = sphi 0, %s207
      %s222 = sphi 0, %s208
      %s226 = sphi 0, %s226
      %s228 = sphi 0, %s226
      %s229 = sphi 0, %s228
      %s243 = sphi 0, %s229
      %s249 = sphi 0, %s251
      %s252 = sphi 0, %s249
      %s253 = sphi 0, %s252
      %s269 = sphi 0, %s253
    $region4: #{tpu_custom_call.1} parent=1 // loop_header_branch
      %27 = sbr.rel (%p25) target = $region8
    $region5: #{tpu_custom_call.1} parent=1 // loop_body
      %s29 = ssub.s32 %s24, 1
      %s30 = ssub.s32 %s24, 2
      %s31 = sadd.s32 %s24, 1
      %s32 = ssub.s32 %s24, %s31
      %p33 = scmp.eq.s32.totalorder %s32, 0
      %s35 = sadd.s32 %s34, 1
      %s36 = scalar_select %p33, %s34, %s35
      %p39 = pneg %p33
      %p40 = scmp.eq.s32.totalorder %s24, 1
      %p41 = por %p39, %p40
      %p42 = scmp.ne.s32.totalorder %s34, %s37
      %p43 = scmp.eq.s32.totalorder %s24, 0
      %p44 = por %p42, %p43
      %p45 = scmp.ne.s32.totalorder %s34, %s37
      %p46 = scmp.eq.s32.totalorder %s29, 1
      %p47 = por %p45, %p46
      %p48 = scmp.ne.s32.totalorder %s37, %s38
      %p49 = scmp.eq.s32.totalorder %s29, 0
      %p50 = por %p48, %p49
      %p51 = scmp.ne.s32.totalorder %s37, %s38
      %p52 = scmp.eq.s32.totalorder %s30, 1
      %p53 = por %p51, %p52
      %p55 = scmp.ne.s32.totalorder %s38, %s54
      %p56 = scmp.eq.s32.totalorder %s30, 0
      %p57 = por %p55, %p56
      %s59 = sadd.s32 %s58, 1
      %p62 = scmp.eq.s32.totalorder %s24, 1
      %p63 = scmp.ne.s32.totalorder %s58, %s60
      %p64 = scmp.eq.s32.totalorder %s24, 0
      %p65 = por %p63, %p64
      %p66 = scmp.ne.s32.totalorder %s58, %s60
      %p67 = scmp.eq.s32.totalorder %s29, 1
      %p68 = por %p66, %p67
      %p69 = scmp.ne.s32.totalorder %s60, %s61
      %p70 = scmp.eq.s32.totalorder %s29, 0
      %p71 = por %p69, %p70
      %p72 = scmp.ne.s32.totalorder %s60, %s61
      %p73 = scmp.eq.s32.totalorder %s30, 1
      %p74 = por %p72, %p73
      %p76 = scmp.ne.s32.totalorder %s61, %s75
      %p77 = scmp.eq.s32.totalorder %s30, 0
      %p78 = por %p76, %p77
      %s80 = sadd.s32 %s79, 1
      %p83 = scmp.eq.s32.totalorder %s24, 1
      %p84 = scmp.ne.s32.totalorder %s79, %s81
      %p85 = scmp.eq.s32.totalorder %s24, 0
      %p86 = por %p84, %p85
      %p87 = scmp.ne.s32.totalorder %s79, %s81
      %p88 = scmp.eq.s32.totalorder %s29, 1
      %p89 = por %p87, %p88
      %p90 = scmp.ne.s32.totalorder %s81, %s82
      %p91 = scmp.eq.s32.totalorder %s29, 0
      %p92 = por %p90, %p91
      %p93 = scmp.ne.s32.totalorder %s81, %s82
      %p94 = scmp.eq.s32.totalorder %s30, 1
      %p95 = por %p93, %p94
      %p97 = scmp.ne.s32.totalorder %s82, %s96
      %p98 = scmp.eq.s32.totalorder %s30, 0
      %p99 = por %p97, %p98
      %s101 = sadd.s32 %s100, 1
      %p104 = scmp.eq.s32.totalorder %s24, 1
      %p105 = scmp.ne.s32.totalorder %s100, %s102
      %p106 = scmp.eq.s32.totalorder %s24, 0
      %p107 = por %p105, %p106
      %p108 = scmp.ne.s32.totalorder %s100, %s102
      %p109 = scmp.eq.s32.totalorder %s29, 1
      %p110 = por %p108, %p109
      %p111 = scmp.ne.s32.totalorder %s102, %s103
      %p112 = scmp.eq.s32.totalorder %s29, 0
      %p113 = por %p111, %p112
      %p114 = scmp.ne.s32.totalorder %s102, %s103
      %p115 = scmp.eq.s32.totalorder %s30, 1
      %p116 = por %p114, %p115
      %p118 = scmp.ne.s32.totalorder %s103, %s117
      %p119 = scmp.eq.s32.totalorder %s30, 0
      %p120 = por %p118, %p119
      %s122 = sadd.s32 %s121, 1
      %p125 = scmp.eq.s32.totalorder %s24, 1
      %p126 = scmp.ne.s32.totalorder %s121, %s123
      %p127 = scmp.eq.s32.totalorder %s24, 0
      %p128 = por %p126, %p127
      %p129 = scmp.ne.s32.totalorder %s121, %s123
      %p130 = scmp.eq.s32.totalorder %s29, 1
      %p131 = por %p129, %p130
      %p132 = scmp.ne.s32.totalorder %s123, %s124
      %p133 = scmp.eq.s32.totalorder %s29, 0
      %p134 = por %p132, %p133
      %p135 = scmp.ne.s32.totalorder %s123, %s124
      %p136 = scmp.eq.s32.totalorder %s30, 1
      %p137 = por %p135, %p136
      %p139 = scmp.ne.s32.totalorder %s124, %s138
      %p140 = scmp.eq.s32.totalorder %s30, 0
      %p141 = por %p139, %p140
      %s143 = sadd.s32 %s142, 1
      %p146 = scmp.eq.s32.totalorder %s24, 1
      %p147 = scmp.ne.s32.totalorder %s142, %s144
      %p148 = scmp.eq.s32.totalorder %s24, 0
      %p149 = por %p147, %p148
      %p150 = scmp.ne.s32.totalorder %s142, %s144
      %p151 = scmp.eq.s32.totalorder %s29, 1
      %p152 = por %p150, %p151
      %p153 = scmp.ne.s32.totalorder %s144, %s145
      %p154 = scmp.eq.s32.totalorder %s29, 0
      %p155 = por %p153, %p154
      %p156 = scmp.ne.s32.totalorder %s144, %s145
      %p157 = scmp.eq.s32.totalorder %s30, 1
      %p158 = por %p156, %p157
      %p160 = scmp.ne.s32.totalorder %s145, %s159
      %p161 = scmp.eq.s32.totalorder %s30, 0
      %p162 = por %p160, %p161
      %s164 = sadd.s32 %s163, 1
      %p167 = scmp.eq.s32.totalorder %s24, 1
      %p168 = scmp.ne.s32.totalorder %s163, %s165
      %p169 = scmp.eq.s32.totalorder %s24, 0
      %p170 = por %p168, %p169
      %p171 = scmp.ne.s32.totalorder %s163, %s165
      %p172 = scmp.eq.s32.totalorder %s29, 1
      %p173 = por %p171, %p172
      %p174 = scmp.ne.s32.totalorder %s165, %s166
      %p175 = scmp.eq.s32.totalorder %s29, 0
      %p176 = por %p174, %p175
      %p177 = scmp.ne.s32.totalorder %s165, %s166
      %p178 = scmp.eq.s32.totalorder %s30, 1
      %p179 = por %p177, %p178
      %p181 = scmp.ne.s32.totalorder %s166, %s180
      %p182 = scmp.eq.s32.totalorder %s30, 0
      %p183 = por %p181, %p182
      %s185 = sadd.s32 %s184, 1
      %p188 = scmp.eq.s32.totalorder %s24, 1
      %p189 = scmp.ne.s32.totalorder %s184, %s186
      %p190 = scmp.eq.s32.totalorder %s24, 0
      %p191 = por %p189, %p190
      %p192 = scmp.ne.s32.totalorder %s184, %s186
      %p193 = scmp.eq.s32.totalorder %s29, 1
      %p194 = por %p192, %p193
      %p195 = scmp.ne.s32.totalorder %s186, %s187
      %p196 = scmp.eq.s32.totalorder %s29, 0
      %p197 = por %p195, %p196
      %p198 = scmp.ne.s32.totalorder %s186, %s187
      %p199 = scmp.eq.s32.totalorder %s30, 1
      %p200 = por %p198, %p199
      %p202 = scmp.ne.s32.totalorder %s187, %s201
      %p203 = scmp.eq.s32.totalorder %s30, 0
      %p204 = por %p202, %p203
      %s206 = sadd.s32 %s205, 1
      %p209 = scmp.eq.s32.totalorder %s24, 1
      %p210 = scmp.ne.s32.totalorder %s205, %s207
      %p211 = scmp.eq.s32.totalorder %s24, 0
      %p212 = por %p210, %p211
      %p213 = scmp.ne.s32.totalorder %s205, %s207
      %p214 = scmp.eq.s32.totalorder %s29, 1
      %p215 = por %p213, %p214
      %p216 = scmp.ne.s32.totalorder %s207, %s208
      %p217 = scmp.eq.s32.totalorder %s29, 0
      %p218 = por %p216, %p217
      %p219 = scmp.ne.s32.totalorder %s207, %s208
      %p220 = scmp.eq.s32.totalorder %s30, 1
      %p221 = por %p219, %p220
      %p223 = scmp.ne.s32.totalorder %s208, %s222
      %p224 = scmp.eq.s32.totalorder %s30, 0
      %p225 = por %p223, %p224
      %s227 = sadd.s32 %s226, 1
      %p230 = scmp.eq.s32.totalorder %s24, 1
      %p231 = scmp.ne.s32.totalorder %s226, %s228
      %p232 = scmp.eq.s32.totalorder %s24, 0
      %p233 = por %p231, %p232
      %p234 = scmp.ne.s32.totalorder %s226, %s228
      %p235 = scmp.eq.s32.totalorder %s29, 1
      %p236 = por %p234, %p235
      %p237 = scmp.ne.s32.totalorder %s228, %s229
      %p238 = scmp.eq.s32.totalorder %s29, 0
      %p239 = por %p237, %p238
      %p240 = scmp.ne.s32.totalorder %s228, %s229
      %p241 = scmp.eq.s32.totalorder %s30, 1
      %p242 = por %p240, %p241
      %p244 = scmp.ne.s32.totalorder %s229, %s243
      %p245 = scmp.eq.s32.totalorder %s30, 0
      %p246 = por %p244, %p245
      %s247 = ssub.s32 %s24, %s31
      %p248 = scmp.eq.s32.totalorder %s247, 0
      %s250 = sadd.s32 %s249, 1
      %s251 = scalar_select %p248, %s249, %s250
      %p254 = pneg %p248
      %p255 = scmp.eq.s32.totalorder %s24, 1
      %p256 = por %p254, %p255
      %p257 = scmp.ne.s32.totalorder %s249, %s252
      %p258 = scmp.eq.s32.totalorder %s24, 0
      %p259 = por %p257, %p258
      %p260 = scmp.ne.s32.totalorder %s249, %s252
      %p261 = scmp.eq.s32.totalorder %s29, 1
      %p262 = por %p260, %p261
      %p263 = scmp.ne.s32.totalorder %s252, %s253
      %p264 = scmp.eq.s32.totalorder %s29, 0
      %p265 = por %p263, %p264
      %p266 = scmp.ne.s32.totalorder %s252, %s253
      %p267 = scmp.eq.s32.totalorder %s30, 1
      %p268 = por %p266, %p267
      %p270 = scmp.ne.s32.totalorder %s253, %s269
      %p271 = scmp.eq.s32.totalorder %s30, 0
      %p272 = por %p270, %p271
      %p273 = scmp.le.s32.totalorder 1, %s24
      %p274 = scmp.lt.s32.totalorder %s24, 3
      %p275 = pnand %p273, %p274
      %p276 = pneg %p275
      // Predicated region
      $region9: #{tpu_custom_call.1} parent=5 // pred_check
        _
      $region10: #{tpu_custom_call.1} parent=5 // pred_check_branch
        %278 = sbr.rel (%p275) target = $region12
      $region11: #{tpu_custom_call.1} parent=5 // pred_region
        %s279 = ssub.s32 %s24, 1
        // Predicated region
        $region13: #{tpu_custom_call.1} parent=11 // pred_check
          %p280 = pneg %p71
        $region14: #{tpu_custom_call.1} parent=11 // pred_check_branch
          %282 = sbr.rel (%p280) target = $region16
        $region15: #{tpu_custom_call.1} parent=11 // pred_region
          %s284 = ssub.s32 256, 256
          %285 = vsyncadd [#allocation6], %s284
          %s286 = sshll.u32 [#allocation5], 4
          %s287 = int_to_ptr.vmem [resolvable:$true] %s286
          %292 = dma.hbm_to_vmem [thread:$0]  %s1, 256, %s287, [#allocation6], 128, 128, 8
        $region16: #{tpu_custom_call.1} parent=11 // pred_fallthru
          _
        // Predicated region
        $region17: #{tpu_custom_call.1} parent=11 // pred_check
          %p293 = pneg %p92
        $region18: #{tpu_custom_call.1} parent=11 // pred_check_branch
          %295 = sbr.rel (%p293) target = $region20
        $region19: #{tpu_custom_call.1} parent=11 // pred_region
          _
        $region20: #{tpu_custom_call.1} parent=11 // pred_fallthru
          _
        // Predicated region
        $region21: #{tpu_custom_call.1} parent=11 // pred_check
          %p296 = pneg %p113
        $region22: #{tpu_custom_call.1} parent=11 // pred_check_branch
          %298 = sbr.rel (%p296) target = $region24
        $region23: #{tpu_custom_call.1} parent=11 // pred_region
          _
        $region24: #{tpu_custom_call.1} parent=11 // pred_fallthru
          _
        // Predicated region
        $region25: #{tpu_custom_call.1} parent=11 // pred_check
          %p299 = pneg %p134
        $region26: #{tpu_custom_call.1} parent=11 // pred_check_branch
          %301 = sbr.rel (%p299) target = $region28
        $region27: #{tpu_custom_call.1} parent=11 // pred_region
          %s303 = ssub.s32 2048, 2048
          %304 = vsyncadd [#allocation6], %s303
          %s305 = sshll.u32 [#allocation7], 4
          %s306 = int_to_ptr.vmem [resolvable:$true] %s305
          %311 = dma.hbm_to_vmem [thread:$0]  %s4, 2048, %s306, [#allocation6], 128, 128, 8
        $region28: #{tpu_custom_call.1} parent=11 // pred_fallthru
          _
        // Predicated region
        $region29: #{tpu_custom_call.1} parent=11 // pred_check
          %p312 = pneg %p155
        $region30: #{tpu_custom_call.1} parent=11 // pred_check_branch
          %314 = sbr.rel (%p312) target = $region32
        $region31: #{tpu_custom_call.1} parent=11 // pred_region
          _
        $region32: #{tpu_custom_call.1} parent=11 // pred_fallthru
          _
        // Predicated region
        $region33: #{tpu_custom_call.1} parent=11 // pred_check
          %p315 = pneg %p176
        $region34: #{tpu_custom_call.1} parent=11 // pred_check_branch
          %317 = sbr.rel (%p315) target = $region36
        $region35: #{tpu_custom_call.1} parent=11 // pred_region
          _
        $region36: #{tpu_custom_call.1} parent=11 // pred_fallthru
          _
        // Predicated region
        $region37: #{tpu_custom_call.1} parent=11 // pred_check
          %p318 = pneg %p197
        $region38: #{tpu_custom_call.1} parent=11 // pred_check_branch
          %320 = sbr.rel (%p318) target = $region40
        $region39: #{tpu_custom_call.1} parent=11 // pred_region
          %s322 = ssub.s32 2048, 2048
          %323 = vsyncadd [#allocation9], %s322
          %s324 = sshll.u32 [#allocation8], 4
          %s325 = int_to_ptr.vmem [resolvable:$true] %s324
          %330 = dma.hbm_to_vmem [thread:$0]  %s7, 2048, %s325, [#allocation9], 128, 128, 8
        $region40: #{tpu_custom_call.1} parent=11 // pred_fallthru
          _
        // Predicated region
        $region41: #{tpu_custom_call.1} parent=11 // pred_check
          %p331 = pneg %p218
        $region42: #{tpu_custom_call.1} parent=11 // pred_check_branch
          %333 = sbr.rel (%p331) target = $region44
        $region43: #{tpu_custom_call.1} parent=11 // pred_region
          _
        $region44: #{tpu_custom_call.1} parent=11 // pred_fallthru
          _
        // Predicated region
        $region45: #{tpu_custom_call.1} parent=11 // pred_check
          %p334 = pneg %p239
        $region46: #{tpu_custom_call.1} parent=11 // pred_check_branch
          %336 = sbr.rel (%p334) target = $region48
        $region47: #{tpu_custom_call.1} parent=11 // pred_region
          _
        $region48: #{tpu_custom_call.1} parent=11 // pred_fallthru
          _
      $region12: #{tpu_custom_call.1} parent=5 // pred_fallthru
        _
      %p337 = scmp.lt.s32.totalorder %s24, 2
      // Predicated region
      $region49: #{tpu_custom_call.1} parent=5 // pred_check
        %p338 = pneg %p337
      $region50: #{tpu_custom_call.1} parent=5 // pred_check_branch
        %340 = sbr.rel (%p338) target = $region52
      $region51: #{tpu_custom_call.1} parent=5 // pred_region
        // Predicated region
        $region53: #{tpu_custom_call.1} parent=51 // pred_check
          %p341 = pneg %p44
        $region54: #{tpu_custom_call.1} parent=51 // pred_check_branch
          %343 = sbr.rel (%p341) target = $region56
        $region55: #{tpu_custom_call.1} parent=51 // pred_region
          %s344 = sand.u32 %s34, 1
          %s345 = scalar_lea.sflag [#allocation3], %s344
          %s346 = sand.u32 %s34, 1
          %s347 = smul.addr %s346, 32
          %s348 = scalar_lea.vmem [#allocation2], %s347
          %s349 = smul.u32 4, %s24
          %s351 = ssub.s32 512, 512
          %352 = vsyncadd %s345, %s351
          %s353 = smul.addr %s349, 128
          %s354 = scalar_lea.hbm %s0, %s353
          %s355 = sshll.u32 %s348, 4
          %s356 = int_to_ptr.vmem [resolvable:$true] %s355
          %361 = dma.hbm_to_vmem [thread:$0]  %s354, 512, %s356, %s345, 128, 128, 8
        $region56: #{tpu_custom_call.1} parent=51 // pred_fallthru
          _
      $region52: #{tpu_custom_call.1} parent=5 // pred_fallthru
        _
      %p362 = scmp.le.s32.totalorder 1, %s24
      %p363 = scmp.lt.s32.totalorder %s24, 3
      %p364 = pnand %p362, %p363
      %p365 = pneg %p364
      // Predicated region
      $region57: #{tpu_custom_call.1} parent=5 // pred_check
        _
      $region58: #{tpu_custom_call.1} parent=5 // pred_check_branch
        %367 = sbr.rel (%p364) target = $region60
      $region59: #{tpu_custom_call.1} parent=5 // pred_region
        %s368 = ssub.s32 %s24, 1
        %s369 = sand.u32 %s37, 1
        %s370 = scalar_lea.sflag [#allocation3], %s369
        %s371 = sand.u32 %s37, 1
        %s372 = smul.addr %s371, 32
        %s373 = scalar_lea.vmem [#allocation2], %s372
        // Predicated region
        $region61: #{tpu_custom_call.1} parent=59 // pred_check
          %p374 = pneg %p50
        $region62: #{tpu_custom_call.1} parent=59 // pred_check_branch
          %376 = sbr.rel (%p374) target = $region64
        $region63: #{tpu_custom_call.1} parent=59 // pred_region
          %377 = dma.done %s370, 512
        $region64: #{tpu_custom_call.1} parent=59 // pred_fallthru
          _
        // Predicated region
        $region65: #{tpu_custom_call.1} parent=59 // pred_check
          %p378 = pneg %p71
        $region66: #{tpu_custom_call.1} parent=59 // pred_check_branch
          %380 = sbr.rel (%p378) target = $region68
        $region67: #{tpu_custom_call.1} parent=59 // pred_region
          %381 = dma.done [#allocation6], 256
        $region68: #{tpu_custom_call.1} parent=59 // pred_fallthru
          _
        // Predicated region
        $region69: #{tpu_custom_call.1} parent=59 // pred_check
          %p382 = pneg %p134
        $region70: #{tpu_custom_call.1} parent=59 // pred_check_branch
          %384 = sbr.rel (%p382) target = $region72
        $region71: #{tpu_custom_call.1} parent=59 // pred_region
          %385 = dma.done [#allocation6], 2048
        $region72: #{tpu_custom_call.1} parent=59 // pred_fallthru
          _
        // Predicated region
        $region73: #{tpu_custom_call.1} parent=59 // pred_check
          %p386 = pneg %p197
        $region74: #{tpu_custom_call.1} parent=59 // pred_check_branch
          %388 = sbr.rel (%p386) target = $region76
        $region75: #{tpu_custom_call.1} parent=59 // pred_region
          %389 = dma.done [#allocation9], 2048
        $region76: #{tpu_custom_call.1} parent=59 // pred_fallthru
          _
        %s390 = sand.u32 %s37, 1
        %s391 = scalar_lea.sflag [#allocation3], %s390
        %s392 = sand.u32 %s37, 1
        %s393 = smul.addr %s392, 32
        %s394 = scalar_lea.vmem [#allocation2], %s393
        %p395 = pneg %p50
        %p396 = pneg %p47
        %p397 = pneg %p71
        %p398 = pneg %p68
        %p399 = pneg %p92
        %p400 = pneg %p89
        %p401 = pneg %p113
        %p402 = pneg %p110
        %p403 = pneg %p134
        %p404 = pneg %p131
        %p405 = pneg %p155
        %p406 = pneg %p152
        %p407 = pneg %p176
        %p408 = pneg %p173
        %p409 = pneg %p197
        %p410 = pneg %p194
        %p411 = pneg %p218
        %p412 = pneg %p215
        %p413 = pneg %p239
        %p414 = pneg %p236
        %p415 = pneg %p265
        %p416 = pneg %p262
        %s417 = sand.u32 %s252, 1
        %s418 = scalar_lea.sflag [#allocation4], %s417
        %s419 = sand.u32 %s252, 1
        %s420 = smul.addr %s419, 32
        %s421 = scalar_lea.vmem [#allocation10], %s420
        %s422 = smul.u32 4, %s29
        %s423 = smul.u32 4, %s29
        %v424 = vld [vmem:[%s373] sm:$0xff]
        %v425 = vld [vmem:[%s373 + $0x8] sm:$0xff]
        %v426 = vld [vmem:[%s373 + $0x10] sm:$0xff]
        %v427 = vld [vmem:[%s373 + $0x18] sm:$0xff]
        %v428 = vld [vmem:[#allocation5] sm:$0xff]
        %v429 = vld [vmem:[#allocation5 + $0x8] sm:$0xff]
        %vm430 = vcmask 130048
        %v432 = vsel %vm430, %v424, 0
        %v435 = vsel %vm430, %v425, 0
        %v438 = vsel %vm430, %v426, 0
        %v441 = vsel %vm430, %v427, 0
        %443 = vmatprep.subr.mxu0 0.0
        %444 = vmatpush1.msra.mxu0 0.0
        %445 = vmatprep.subr.mxu0 0.0
        %446 = vmatpush1.msra.mxu0 0.0
        %447 = vmatprep.subr.mxu0 0.0
        %448 = vmatpush1.msra.mxu0 0.0
        %449 = vmatprep.subr.mxu0 0.0
        %450 = vmatpush1.msra.mxu0 0.0
        %451 = vmatprep.subr.mxu0 0.0
        %452 = vmatpush1.msra.mxu0 0.0
        %453 = vmatprep.subr.mxu0 0.0
        %454 = vmatpush1.msra.mxu0 0.0
        %455 = vmatprep.subr.mxu0 0.0
        %456 = vmatpush1.msra.mxu0 0.0
        %457 = vmatprep.subr.mxu0 0.0
        %458 = vmatpush1.msra.mxu0 0.0
        %459 = vmatprep.subr.mxu0 0.0
        %460 = vmatpush1.msra.mxu0 0.0
        %461 = vmatprep.subr.mxu0 0.0
        %462 = vmatpush1.msra.mxu0 0.0
        %463 = vmatprep.subr.mxu0 0.0
        %464 = vmatpush1.msra.mxu0 0.0
        %465 = vmatprep.subr.mxu0 0.0
        %466 = vmatpush1.msra.mxu0 0.0
        %467 = vmatprep.subr.mxu0 0.0
        %468 = vmatpush1.msra.mxu0 0.0
        %469 = vmatprep.subr.mxu0 0.0
        %470 = vmatpush1.msra.mxu0 0.0
        %471 = vmatprep.subr.mxu0 0.0
        %472 = vmatpush1.msra.mxu0 %v429
        %473 = vmatprep.subr.mxu0 0.0
        %474 = vmatpush1.msra.mxu0 %v428
        %475 = vmatprep.subr.mxu0 0.0
        %476 = vmatpush2.msra.mxu0 0.0
        %477 = vmatprep.subr.mxu0 0.0
        %478 = vmatpush2.msra.mxu0 0.0
        %479 = vmatprep.subr.mxu0 0.0
        %480 = vmatpush2.msra.mxu0 0.0
        %481 = vmatprep.subr.mxu0 0.0
        %482 = vmatpush2.msra.mxu0 0.0
        %483 = vmatprep.subr.mxu0 0.0
        %484 = vmatpush2.msra.mxu0 0.0
        %485 = vmatprep.subr.mxu0 0.0
        %486 = vmatpush2.msra.mxu0 0.0
        %487 = vmatprep.subr.mxu0 0.0
        %488 = vmatpush2.msra.mxu0 0.0
        %489 = vmatprep.subr.mxu0 0.0
        %490 = vmatpush2.msra.mxu0 0.0
        %491 = vmatprep.subr.mxu0 0.0
        %492 = vmatpush2.msra.mxu0 0.0
        %493 = vmatprep.subr.mxu0 0.0
        %494 = vmatpush2.msra.mxu0 0.0
        %495 = vmatprep.subr.mxu0 0.0
        %496 = vmatpush2.msra.mxu0 0.0
        %497 = vmatprep.subr.mxu0 0.0
        %498 = vmatpush2.msra.mxu0 0.0
        %499 = vmatprep.subr.mxu0 0.0
        %500 = vmatpush2.msra.mxu0 0.0
        %501 = vmatprep.subr.mxu0 0.0
        %502 = vmatpush2.msra.mxu0 0.0
        %503 = vmatprep.subr.mxu0 0.0
        %504 = vmatpush2.msra.mxu0 0.0
        %505 = vmatprep.subr.mxu0 0.0
        %506 = vmatpush2.msra.mxu0 0.0
        %507 = vmatprep.mubr.f32.mxu0 0.0
        %508 = vmatmul.mubr.f32.gmra.mxu0 %v432
        %v509 = vpop.f32.mrf.mxu0
        %v510 = vadd.f32 0.0, %v509
        %v511 = vpop.f32.mrf.mxu0
        %512 = vmatprep.mubr.f32.mxu0 0.0
        %513 = vmatmul.mubr.f32.gmra.mxu0 %v435
        %v514 = vpop.f32.mrf.mxu0
        %v515 = vadd.f32 0.0, %v514
        %v516 = vpop.f32.mrf.mxu0
        %517 = vmatprep.mubr.f32.mxu0 0.0
        %518 = vmatmul.mubr.f32.gmra.mxu0 %v438
        %v519 = vpop.f32.mrf.mxu0
        %v520 = vadd.f32 0.0, %v519
        %v521 = vpop.f32.mrf.mxu0
        %522 = vmatprep.mubr.f32.mxu0 0.0
        %523 = vmatmul.mubr.f32.gmra.mxu0 %v441
        %v524 = vpop.f32.mrf.mxu0
        %v525 = vadd.f32 0.0, %v524
        %v526 = vpop.f32.mrf.mxu0
        %527 = vdwg.mxu0
        %v528 = vlaneseq
        %v529 = vshrl.u32 %v528, 7
        %v530 = vsub.s32 0, %v529
        %v531 = vrot.slane %v510, %v530
        %v532 = vlaneseq
        %v533 = vshrl.u32 %v532, 7
        %v534 = vsub.s32 0, %v533
        %v535 = vrot.slane %v515, %v534
        %v536 = vlaneseq
        %v537 = vshrl.u32 %v536, 7
        %v538 = vsub.s32 0, %v537
        %v539 = vrot.slane %v520, %v538
        %v540 = vlaneseq
        %v541 = vshrl.u32 %v540, 7
        %v542 = vsub.s32 0, %v541
        %v543 = vrot.slane %v525, %v542
        %v544 = vsub.f32 %v510, %v531
        %v545 = vsub.f32 %v515, %v535
        %v546 = vsub.f32 %v520, %v539
        %v547 = vsub.f32 %v525, %v543
        %v548 = vrot.slane %v544, 4
        %v549 = vadd.f32 %v544, %v548
        %v550 = vrot.slane %v549, 2
        %v551 = vadd.f32 %v549, %v550
        %v552 = vrot.slane %v551, 1
        %v553 = vadd.f32 %v551, %v552
        %v554 = vrot.slane %v545, 4
        %v555 = vadd.f32 %v545, %v554
        %v556 = vrot.slane %v555, 2
        %v557 = vadd.f32 %v555, %v556
        %v558 = vrot.slane %v557, 1
        %v559 = vadd.f32 %v557, %v558
        %v560 = vrot.slane %v546, 4
        %v561 = vadd.f32 %v546, %v560
        %v562 = vrot.slane %v561, 2
        %v563 = vadd.f32 %v561, %v562
        %v564 = vrot.slane %v563, 1
        %v565 = vadd.f32 %v563, %v564
        %v566 = vrot.slane %v547, 4
        %v567 = vadd.f32 %v547, %v566
        %v568 = vrot.slane %v567, 2
        %v569 = vadd.f32 %v567, %v568
        %v570 = vrot.slane %v569, 1
        %v571 = vadd.f32 %v569, %v570
        %v572 = vrcp.pop 8.0
        %v573 = vmul.f32 %v553, %v572
        %v574 = vmul.f32 %v559, %v572
        %v575 = vmul.f32 %v565, %v572
        %v576 = vmul.f32 %v571, %v572
        %v577 = vmul.f32 %v544, %v544
        %v578 = vmul.f32 %v545, %v545
        %v579 = vmul.f32 %v546, %v546
        %v580 = vmul.f32 %v547, %v547
        %v581 = vrot.slane %v577, 4
        %v582 = vadd.f32 %v577, %v581
        %v583 = vrot.slane %v582, 2
        %v584 = vadd.f32 %v582, %v583
        %v585 = vrot.slane %v584, 1
        %v586 = vadd.f32 %v584, %v585
        %v587 = vrot.slane %v578, 4
        %v588 = vadd.f32 %v578, %v587
        %v589 = vrot.slane %v588, 2
        %v590 = vadd.f32 %v588, %v589
        %v591 = vrot.slane %v590, 1
        %v592 = vadd.f32 %v590, %v591
        %v593 = vrot.slane %v579, 4
        %v594 = vadd.f32 %v579, %v593
        %v595 = vrot.slane %v594, 2
        %v596 = vadd.f32 %v594, %v595
        %v597 = vrot.slane %v596, 1
        %v598 = vadd.f32 %v596, %v597
        %v599 = vrot.slane %v580, 4
        %v600 = vadd.f32 %v580, %v599
        %v601 = vrot.slane %v600, 2
        %v602 = vadd.f32 %v600, %v601
        %v603 = vrot.slane %v602, 1
        %v604 = vadd.f32 %v602, %v603
        %v605 = vmul.f32 %v586, %v572
        %v606 = vmul.f32 %v592, %v572
        %v607 = vmul.f32 %v598, %v572
        %v608 = vmul.f32 %v604, %v572
        %v609 = vmul.f32 %v573, %v573
        %v610 = vmul.f32 %v574, %v574
        %v611 = vmul.f32 %v575, %v575
        %v612 = vmul.f32 %v576, %v576
        %v613 = vsub.f32 %v605, %v609
        %v614 = vsub.f32 %v606, %v610
        %v615 = vsub.f32 %v607, %v611
        %v616 = vsub.f32 %v608, %v612
        %v617 = vadd.f32 %v573, %v510
        %v618 = vadd.f32 %v574, %v515
        %v619 = vadd.f32 %v575, %v520
        %v620 = vadd.f32 %v576, %v525
        %v621 = vld [vmem:[%s2] sm:$0x1]
        %v622 = vadd.f32 %v613, 1e-05
        %v623 = vadd.f32 %v614, 1e-05
        %v624 = vadd.f32 %v615, 1e-05
        %v625 = vadd.f32 %v616, 1e-05
        %v626 = vrsqrt.pop %v622
        %v627 = vrsqrt.pop %v623
        %v628 = vrsqrt.pop %v624
        %v629 = vrsqrt.pop %v625
        %v630 = vmul.f32 %v621, %v626
        %v631 = vmul.f32 %v621, %v627
        %v632 = vmul.f32 %v621, %v628
        %v633 = vmul.f32 %v621, %v629
        %v634 = vld [vmem:[%s3] sm:$0x1]
        %v635 = vmul.f32 %v617, %v630
        %v636 = vmul.f32 %v618, %v631
        %v637 = vmul.f32 %v619, %v632
        %v638 = vmul.f32 %v620, %v633
        %v639 = vsub.f32 %v634, %v635
        %v640 = vsub.f32 %v634, %v636
        %v641 = vsub.f32 %v634, %v637
        %v642 = vsub.f32 %v634, %v638
        %v647 = vlaneseq
        %v648 = vshrl.u32 %v647, 7
        %v649 = vsub.s32 0, %v648
        %v650 = vrot.slane %v630, %v649
        %v651 = vlaneseq
        %v652 = vshrl.u32 %v651, 7
        %v653 = vsub.s32 0, %v652
        %v654 = vrot.slane %v631, %v653
        %v655 = vlaneseq
        %v656 = vshrl.u32 %v655, 7
        %v657 = vsub.s32 0, %v656
        %v658 = vrot.slane %v632, %v657
        %v659 = vlaneseq
        %v660 = vshrl.u32 %v659, 7
        %v661 = vsub.s32 0, %v660
        %v662 = vrot.slane %v633, %v661
        %v667 = vmul.f32 %v510, %v650
        %v668 = vmul.f32 %v515, %v654
        %v669 = vmul.f32 %v520, %v658
        %v670 = vmul.f32 %v525, %v662
        %v675 = vlaneseq
        %v676 = vshrl.u32 %v675, 7
        %v677 = vsub.s32 0, %v676
        %v678 = vrot.slane %v639, %v677
        %v679 = vlaneseq
        %v680 = vshrl.u32 %v679, 7
        %v681 = vsub.s32 0, %v680
        %v682 = vrot.slane %v640, %v681
        %v683 = vlaneseq
        %v684 = vshrl.u32 %v683, 7
        %v685 = vsub.s32 0, %v684
        %v686 = vrot.slane %v641, %v685
        %v687 = vlaneseq
        %v688 = vshrl.u32 %v687, 7
        %v689 = vsub.s32 0, %v688
        %v690 = vrot.slane %v642, %v689
        %v695 = vadd.f32 %v667, %v678
        %v696 = vadd.f32 %v668, %v682
        %v697 = vadd.f32 %v669, %v686
        %v698 = vadd.f32 %v670, %v690
        %v699 = vmax.f32 %v695, 0.0
        %v700 = vmax.f32 %v696, 0.0
        %v701 = vmax.f32 %v697, 0.0
        %v702 = vmax.f32 %v698, 0.0
        %v703 = vld [vmem:[#allocation7] sm:$0xff]
        %v704 = vld [vmem:[#allocation7 + $0x8] sm:$0xff]
        %v705 = vld [vmem:[#allocation7 + $0x10] sm:$0xff]
        %v706 = vld [vmem:[#allocation7 + $0x18] sm:$0xff]
        %v707 = vld [vmem:[#allocation7 + $0x20] sm:$0xff]
        %v708 = vld [vmem:[#allocation7 + $0x28] sm:$0xff]
        %v709 = vld [vmem:[#allocation7 + $0x30] sm:$0xff]
        %v710 = vld [vmem:[#allocation7 + $0x38] sm:$0xff]
        %v711 = vld [vmem:[#allocation7 + $0x40] sm:$0xff]
        %v712 = vld [vmem:[#allocation7 + $0x48] sm:$0xff]
        %v713 = vld [vmem:[#allocation7 + $0x50] sm:$0xff]
        %v714 = vld [vmem:[#allocation7 + $0x58] sm:$0xff]
        %v715 = vld [vmem:[#allocation7 + $0x60] sm:$0xff]
        %v716 = vld [vmem:[#allocation7 + $0x68] sm:$0xff]
        %v717 = vld [vmem:[#allocation7 + $0x70] sm:$0xff]
        %v718 = vld [vmem:[#allocation7 + $0x78] sm:$0xff]
        %719 = vmatprep.subr.mxu0 0.0
        %720 = vmatpush1.msra.mxu0 %v718
        %721 = vmatprep.subr.mxu0 0.0
        %722 = vmatpush1.msra.mxu0 %v717
        %723 = vmatprep.subr.mxu0 0.0
        %724 = vmatpush1.msra.mxu0 %v716
        %725 = vmatprep.subr.mxu0 0.0
        %726 = vmatpush1.msra.mxu0 %v715
        %727 = vmatprep.subr.mxu0 0.0
        %728 = vmatpush1.msra.mxu0 %v714
        %729 = vmatprep.subr.mxu0 0.0
        %730 = vmatpush1.msra.mxu0 %v713
        %731 = vmatprep.subr.mxu0 0.0
        %732 = vmatpush1.msra.mxu0 %v712
        %733 = vmatprep.subr.mxu0 0.0
        %734 = vmatpush1.msra.mxu0 %v711
        %735 = vmatprep.subr.mxu0 0.0
        %736 = vmatpush1.msra.mxu0 %v710
        %737 = vmatprep.subr.mxu0 0.0
        %738 = vmatpush1.msra.mxu0 %v709
        %739 = vmatprep.subr.mxu0 0.0
        %740 = vmatpush1.msra.mxu0 %v708
        %741 = vmatprep.subr.mxu0 0.0
        %742 = vmatpush1.msra.mxu0 %v707
        %743 = vmatprep.subr.mxu0 0.0
        %744 = vmatpush1.msra.mxu0 %v706
        %745 = vmatprep.subr.mxu0 0.0
        %746 = vmatpush1.msra.mxu0 %v705
        %747 = vmatprep.subr.mxu0 0.0
        %748 = vmatpush1.msra.mxu0 %v704
        %749 = vmatprep.subr.mxu0 0.0
        %750 = vmatpush1.msra.mxu0 %v703
        %751 = vmatprep.subr.mxu0 0.0
        %752 = vmatpush2.msra.mxu0 0.0
        %753 = vmatprep.subr.mxu0 0.0
        %754 = vmatpush2.msra.mxu0 0.0
        %755 = vmatprep.subr.mxu0 0.0
        %756 = vmatpush2.msra.mxu0 0.0
        %757 = vmatprep.subr.mxu0 0.0
        %758 = vmatpush2.msra.mxu0 0.0
        %759 = vmatprep.subr.mxu0 0.0
        %760 = vmatpush2.msra.mxu0 0.0
        %761 = vmatprep.subr.mxu0 0.0
        %762 = vmatpush2.msra.mxu0 0.0
        %763 = vmatprep.subr.mxu0 0.0
        %764 = vmatpush2.msra.mxu0 0.0
        %765 = vmatprep.subr.mxu0 0.0
        %766 = vmatpush2.msra.mxu0 0.0
        %767 = vmatprep.subr.mxu0 0.0
        %768 = vmatpush2.msra.mxu0 0.0
        %769 = vmatprep.subr.mxu0 0.0
        %770 = vmatpush2.msra.mxu0 0.0
        %771 = vmatprep.subr.mxu0 0.0
        %772 = vmatpush2.msra.mxu0 0.0
        %773 = vmatprep.subr.mxu0 0.0
        %774 = vmatpush2.msra.mxu0 0.0
        %775 = vmatprep.subr.mxu0 0.0
        %776 = vmatpush2.msra.mxu0 0.0
        %777 = vmatprep.subr.mxu0 0.0
        %778 = vmatpush2.msra.mxu0 0.0
        %779 = vmatprep.subr.mxu0 0.0
        %780 = vmatpush2.msra.mxu0 0.0
        %781 = vmatprep.subr.mxu0 0.0
        %782 = vmatpush2.msra.mxu0 0.0
        %783 = vmatprep.mubr.f32.mxu0 0.0
        %784 = vmatmul.mubr.f32.gmra.mxu0 %v699
        %v785 = vpop.f32.mrf.mxu0
        %v786 = vadd.f32 0.0, %v785
        %v787 = vpop.f32.mrf.mxu0
        %788 = vmatprep.mubr.f32.mxu0 0.0
        %789 = vmatmul.mubr.f32.gmra.mxu0 %v700
        %v790 = vpop.f32.mrf.mxu0
        %v791 = vadd.f32 0.0, %v790
        %v792 = vpop.f32.mrf.mxu0
        %793 = vmatprep.mubr.f32.mxu0 0.0
        %794 = vmatmul.mubr.f32.gmra.mxu0 %v701
        %v795 = vpop.f32.mrf.mxu0
        %v796 = vadd.f32 0.0, %v795
        %v797 = vpop.f32.mrf.mxu0
        %798 = vmatprep.mubr.f32.mxu0 0.0
        %799 = vmatmul.mubr.f32.gmra.mxu0 %v702
        %v800 = vpop.f32.mrf.mxu0
        %v801 = vadd.f32 0.0, %v800
        %v802 = vpop.f32.mrf.mxu0
        %803 = vdwg.mxu0
        %v804 = vlaneseq
        %v805 = vshrl.u32 %v804, 7
        %v806 = vsub.s32 0, %v805
        %v807 = vrot.slane %v786, %v806
        %v808 = vlaneseq
        %v809 = vshrl.u32 %v808, 7
        %v810 = vsub.s32 0, %v809
        %v811 = vrot.slane %v791, %v810
        %v812 = vlaneseq
        %v813 = vshrl.u32 %v812, 7
        %v814 = vsub.s32 0, %v813
        %v815 = vrot.slane %v796, %v814
        %v816 = vlaneseq
        %v817 = vshrl.u32 %v816, 7
        %v818 = vsub.s32 0, %v817
        %v819 = vrot.slane %v801, %v818
        %v820 = vsub.f32 %v786, %v807
        %v821 = vsub.f32 %v791, %v811
        %v822 = vsub.f32 %v796, %v815
        %v823 = vsub.f32 %v801, %v819
        %v824 = vrot.slane %v820, 4
        %v825 = vadd.f32 %v820, %v824
        %v826 = vrot.slane %v825, 2
        %v827 = vadd.f32 %v825, %v826
        %v828 = vrot.slane %v827, 1
        %v829 = vadd.f32 %v827, %v828
        %v830 = vrot.slane %v821, 4
        %v831 = vadd.f32 %v821, %v830
        %v832 = vrot.slane %v831, 2
        %v833 = vadd.f32 %v831, %v832
        %v834 = vrot.slane %v833, 1
        %v835 = vadd.f32 %v833, %v834
        %v836 = vrot.slane %v822, 4
        %v837 = vadd.f32 %v822, %v836
        %v838 = vrot.slane %v837, 2
        %v839 = vadd.f32 %v837, %v838
        %v840 = vrot.slane %v839, 1
        %v841 = vadd.f32 %v839, %v840
        %v842 = vrot.slane %v823, 4
        %v843 = vadd.f32 %v823, %v842
        %v844 = vrot.slane %v843, 2
        %v845 = vadd.f32 %v843, %v844
        %v846 = vrot.slane %v845, 1
        %v847 = vadd.f32 %v845, %v846
        %v848 = vmul.f32 %v829, %v572
        %v849 = vmul.f32 %v835, %v572
        %v850 = vmul.f32 %v841, %v572
        %v851 = vmul.f32 %v847, %v572
        %v852 = vmul.f32 %v820, %v820
        %v853 = vmul.f32 %v821, %v821
        %v854 = vmul.f32 %v822, %v822
        %v855 = vmul.f32 %v823, %v823
        %v856 = vrot.slane %v852, 4
        %v857 = vadd.f32 %v852, %v856
        %v858 = vrot.slane %v857, 2
        %v859 = vadd.f32 %v857, %v858
        %v860 = vrot.slane %v859, 1
        %v861 = vadd.f32 %v859, %v860
        %v862 = vrot.slane %v853, 4
        %v863 = vadd.f32 %v853, %v862
        %v864 = vrot.slane %v863, 2
        %v865 = vadd.f32 %v863, %v864
        %v866 = vrot.slane %v865, 1
        %v867 = vadd.f32 %v865, %v866
        %v868 = vrot.slane %v854, 4
        %v869 = vadd.f32 %v854, %v868
        %v870 = vrot.slane %v869, 2
        %v871 = vadd.f32 %v869, %v870
        %v872 = vrot.slane %v871, 1
        %v873 = vadd.f32 %v871, %v872
        %v874 = vrot.slane %v855, 4
        %v875 = vadd.f32 %v855, %v874
        %v876 = vrot.slane %v875, 2
        %v877 = vadd.f32 %v875, %v876
        %v878 = vrot.slane %v877, 1
        %v879 = vadd.f32 %v877, %v878
        %v880 = vmul.f32 %v861, %v572
        %v881 = vmul.f32 %v867, %v572
        %v882 = vmul.f32 %v873, %v572
        %v883 = vmul.f32 %v879, %v572
        %v884 = vmul.f32 %v848, %v848
        %v885 = vmul.f32 %v849, %v849
        %v886 = vmul.f32 %v850, %v850
        %v887 = vmul.f32 %v851, %v851
        %v888 = vsub.f32 %v880, %v884
        %v889 = vsub.f32 %v881, %v885
        %v890 = vsub.f32 %v882, %v886
        %v891 = vsub.f32 %v883, %v887
        %v892 = vadd.f32 %v848, %v786
        %v893 = vadd.f32 %v849, %v791
        %v894 = vadd.f32 %v850, %v796
        %v895 = vadd.f32 %v851, %v801
        %v896 = vld [vmem:[%s5] sm:$0x1]
        %v897 = vadd.f32 %v888, 1e-05
        %v898 = vadd.f32 %v889, 1e-05
        %v899 = vadd.f32 %v890, 1e-05
        %v900 = vadd.f32 %v891, 1e-05
        %v901 = vrsqrt.pop %v897
        %v902 = vrsqrt.pop %v898
        %v903 = vrsqrt.pop %v899
        %v904 = vrsqrt.pop %v900
        %v905 = vmul.f32 %v896, %v901
        %v906 = vmul.f32 %v896, %v902
        %v907 = vmul.f32 %v896, %v903
        %v908 = vmul.f32 %v896, %v904
        %v909 = vld [vmem:[%s6] sm:$0x1]
        %v910 = vmul.f32 %v892, %v905
        %v911 = vmul.f32 %v893, %v906
        %v912 = vmul.f32 %v894, %v907
        %v913 = vmul.f32 %v895, %v908
        %v914 = vsub.f32 %v909, %v910
        %v915 = vsub.f32 %v909, %v911
        %v916 = vsub.f32 %v909, %v912
        %v917 = vsub.f32 %v909, %v913
        %v922 = vlaneseq
        %v923 = vshrl.u32 %v922, 7
        %v924 = vsub.s32 0, %v923
        %v925 = vrot.slane %v905, %v924
        %v926 = vlaneseq
        %v927 = vshrl.u32 %v926, 7
        %v928 = vsub.s32 0, %v927
        %v929 = vrot.slane %v906, %v928
        %v930 = vlaneseq
        %v931 = vshrl.u32 %v930, 7
        %v932 = vsub.s32 0, %v931
        %v933 = vrot.slane %v907, %v932
        %v934 = vlaneseq
        %v935 = vshrl.u32 %v934, 7
        %v936 = vsub.s32 0, %v935
        %v937 = vrot.slane %v908, %v936
        %v942 = vmul.f32 %v786, %v925
        %v943 = vmul.f32 %v791, %v929
        %v944 = vmul.f32 %v796, %v933
        %v945 = vmul.f32 %v801, %v937
        %v950 = vlaneseq
        %v951 = vshrl.u32 %v950, 7
        %v952 = vsub.s32 0, %v951
        %v953 = vrot.slane %v914, %v952
        %v954 = vlaneseq
        %v955 = vshrl.u32 %v954, 7
        %v956 = vsub.s32 0, %v955
        %v957 = vrot.slane %v915, %v956
        %v958 = vlaneseq
        %v959 = vshrl.u32 %v958, 7
        %v960 = vsub.s32 0, %v959
        %v961 = vrot.slane %v916, %v960
        %v962 = vlaneseq
        %v963 = vshrl.u32 %v962, 7
        %v964 = vsub.s32 0, %v963
        %v965 = vrot.slane %v917, %v964
        %v970 = vadd.f32 %v942, %v953
        %v971 = vadd.f32 %v943, %v957
        %v972 = vadd.f32 %v944, %v961
        %v973 = vadd.f32 %v945, %v965
        %v974 = vmax.f32 %v970, 0.0
        %v975 = vmax.f32 %v971, 0.0
        %v976 = vmax.f32 %v972, 0.0
        %v977 = vmax.f32 %v973, 0.0
        %v978 = vld [vmem:[#allocation8] sm:$0xff]
        %v979 = vld [vmem:[#allocation8 + $0x8] sm:$0xff]
        %v980 = vld [vmem:[#allocation8 + $0x10] sm:$0xff]
        %v981 = vld [vmem:[#allocation8 + $0x18] sm:$0xff]
        %v982 = vld [vmem:[#allocation8 + $0x20] sm:$0xff]
        %v983 = vld [vmem:[#allocation8 + $0x28] sm:$0xff]
        %v984 = vld [vmem:[#allocation8 + $0x30] sm:$0xff]
        %v985 = vld [vmem:[#allocation8 + $0x38] sm:$0xff]
        %v986 = vld [vmem:[#allocation8 + $0x40] sm:$0xff]
        %v987 = vld [vmem:[#allocation8 + $0x48] sm:$0xff]
        %v988 = vld [vmem:[#allocation8 + $0x50] sm:$0xff]
        %v989 = vld [vmem:[#allocation8 + $0x58] sm:$0xff]
        %v990 = vld [vmem:[#allocation8 + $0x60] sm:$0xff]
        %v991 = vld [vmem:[#allocation8 + $0x68] sm:$0xff]
        %v992 = vld [vmem:[#allocation8 + $0x70] sm:$0xff]
        %v993 = vld [vmem:[#allocation8 + $0x78] sm:$0xff]
        %994 = vmatprep.subr.mxu0 0.0
        %995 = vmatpush1.msra.mxu0 %v993
        %996 = vmatprep.subr.mxu0 0.0
        %997 = vmatpush1.msra.mxu0 %v992
        %998 = vmatprep.subr.mxu0 0.0
        %999 = vmatpush1.msra.mxu0 %v991
        %1000 = vmatprep.subr.mxu0 0.0
        %1001 = vmatpush1.msra.mxu0 %v990
        %1002 = vmatprep.subr.mxu0 0.0
        %1003 = vmatpush1.msra.mxu0 %v989
        %1004 = vmatprep.subr.mxu0 0.0
        %1005 = vmatpush1.msra.mxu0 %v988
        %1006 = vmatprep.subr.mxu0 0.0
        %1007 = vmatpush1.msra.mxu0 %v987
        %1008 = vmatprep.subr.mxu0 0.0
        %1009 = vmatpush1.msra.mxu0 %v986
        %1010 = vmatprep.subr.mxu0 0.0
        %1011 = vmatpush1.msra.mxu0 %v985
        %1012 = vmatprep.subr.mxu0 0.0
        %1013 = vmatpush1.msra.mxu0 %v984
        %1014 = vmatprep.subr.mxu0 0.0
        %1015 = vmatpush1.msra.mxu0 %v983
        %1016 = vmatprep.subr.mxu0 0.0
        %1017 = vmatpush1.msra.mxu0 %v982
        %1018 = vmatprep.subr.mxu0 0.0
        %1019 = vmatpush1.msra.mxu0 %v981
        %1020 = vmatprep.subr.mxu0 0.0
        %1021 = vmatpush1.msra.mxu0 %v980
        %1022 = vmatprep.subr.mxu0 0.0
        %1023 = vmatpush1.msra.mxu0 %v979
        %1024 = vmatprep.subr.mxu0 0.0
        %1025 = vmatpush1.msra.mxu0 %v978
        %1026 = vmatprep.subr.mxu0 0.0
        %1027 = vmatpush2.msra.mxu0 0.0
        %1028 = vmatprep.subr.mxu0 0.0
        %1029 = vmatpush2.msra.mxu0 0.0
        %1030 = vmatprep.subr.mxu0 0.0
        %1031 = vmatpush2.msra.mxu0 0.0
        %1032 = vmatprep.subr.mxu0 0.0
        %1033 = vmatpush2.msra.mxu0 0.0
        %1034 = vmatprep.subr.mxu0 0.0
        %1035 = vmatpush2.msra.mxu0 0.0
        %1036 = vmatprep.subr.mxu0 0.0
        %1037 = vmatpush2.msra.mxu0 0.0
        %1038 = vmatprep.subr.mxu0 0.0
        %1039 = vmatpush2.msra.mxu0 0.0
        %1040 = vmatprep.subr.mxu0 0.0
        %1041 = vmatpush2.msra.mxu0 0.0
        %1042 = vmatprep.subr.mxu0 0.0
        %1043 = vmatpush2.msra.mxu0 0.0
        %1044 = vmatprep.subr.mxu0 0.0
        %1045 = vmatpush2.msra.mxu0 0.0
        %1046 = vmatprep.subr.mxu0 0.0
        %1047 = vmatpush2.msra.mxu0 0.0
        %1048 = vmatprep.subr.mxu0 0.0
        %1049 = vmatpush2.msra.mxu0 0.0
        %1050 = vmatprep.subr.mxu0 0.0
        %1051 = vmatpush2.msra.mxu0 0.0
        %1052 = vmatprep.subr.mxu0 0.0
        %1053 = vmatpush2.msra.mxu0 0.0
        %1054 = vmatprep.subr.mxu0 0.0
        %1055 = vmatpush2.msra.mxu0 0.0
        %1056 = vmatprep.subr.mxu0 0.0
        %1057 = vmatpush2.msra.mxu0 0.0
        %1058 = vmatprep.mubr.f32.mxu0 0.0
        %1059 = vmatmul.mubr.f32.gmra.mxu0 %v974
        %v1060 = vpop.f32.mrf.mxu0
        %v1061 = vadd.f32 0.0, %v1060
        %v1062 = vpop.f32.mrf.mxu0
        %1063 = vmatprep.mubr.f32.mxu0 0.0
        %1064 = vmatmul.mubr.f32.gmra.mxu0 %v975
        %v1065 = vpop.f32.mrf.mxu0
        %v1066 = vadd.f32 0.0, %v1065
        %v1067 = vpop.f32.mrf.mxu0
        %1068 = vmatprep.mubr.f32.mxu0 0.0
        %1069 = vmatmul.mubr.f32.gmra.mxu0 %v976
        %v1070 = vpop.f32.mrf.mxu0
        %v1071 = vadd.f32 0.0, %v1070
        %v1072 = vpop.f32.mrf.mxu0
        %1073 = vmatprep.mubr.f32.mxu0 0.0
        %1074 = vmatmul.mubr.f32.gmra.mxu0 %v977
        %v1075 = vpop.f32.mrf.mxu0
        %v1076 = vadd.f32 0.0, %v1075
        %v1077 = vpop.f32.mrf.mxu0
        %1078 = vdwg.mxu0
        %v1079 = vlaneseq
        %v1080 = vshrl.u32 %v1079, 7
        %v1081 = vsub.s32 0, %v1080
        %v1082 = vrot.slane %v1061, %v1081
        %v1083 = vlaneseq
        %v1084 = vshrl.u32 %v1083, 7
        %v1085 = vsub.s32 0, %v1084
        %v1086 = vrot.slane %v1066, %v1085
        %v1087 = vlaneseq
        %v1088 = vshrl.u32 %v1087, 7
        %v1089 = vsub.s32 0, %v1088
        %v1090 = vrot.slane %v1071, %v1089
        %v1091 = vlaneseq
        %v1092 = vshrl.u32 %v1091, 7
        %v1093 = vsub.s32 0, %v1092
        %v1094 = vrot.slane %v1076, %v1093
        %v1095 = vsub.f32 %v1061, %v1082
        %v1096 = vsub.f32 %v1066, %v1086
        %v1097 = vsub.f32 %v1071, %v1090
        %v1098 = vsub.f32 %v1076, %v1094
        %v1099 = vrot.slane %v1095, 4
        %v1100 = vadd.f32 %v1095, %v1099
        %v1101 = vrot.slane %v1100, 2
        %v1102 = vadd.f32 %v1100, %v1101
        %v1103 = vrot.slane %v1102, 1
        %v1104 = vadd.f32 %v1102, %v1103
        %v1105 = vrot.slane %v1096, 4
        %v1106 = vadd.f32 %v1096, %v1105
        %v1107 = vrot.slane %v1106, 2
        %v1108 = vadd.f32 %v1106, %v1107
        %v1109 = vrot.slane %v1108, 1
        %v1110 = vadd.f32 %v1108, %v1109
        %v1111 = vrot.slane %v1097, 4
        %v1112 = vadd.f32 %v1097, %v1111
        %v1113 = vrot.slane %v1112, 2
        %v1114 = vadd.f32 %v1112, %v1113
        %v1115 = vrot.slane %v1114, 1
        %v1116 = vadd.f32 %v1114, %v1115
        %v1117 = vrot.slane %v1098, 4
        %v1118 = vadd.f32 %v1098, %v1117
        %v1119 = vrot.slane %v1118, 2
        %v1120 = vadd.f32 %v1118, %v1119
        %v1121 = vrot.slane %v1120, 1
        %v1122 = vadd.f32 %v1120, %v1121
        %v1123 = vmul.f32 %v1104, %v572
        %v1124 = vmul.f32 %v1110, %v572
        %v1125 = vmul.f32 %v1116, %v572
        %v1126 = vmul.f32 %v1122, %v572
        %v1127 = vmul.f32 %v1095, %v1095
        %v1128 = vmul.f32 %v1096, %v1096
        %v1129 = vmul.f32 %v1097, %v1097
        %v1130 = vmul.f32 %v1098, %v1098
        %v1131 = vrot.slane %v1127, 4
        %v1132 = vadd.f32 %v1127, %v1131
        %v1133 = vrot.slane %v1132, 2
        %v1134 = vadd.f32 %v1132, %v1133
        %v1135 = vrot.slane %v1134, 1
        %v1136 = vadd.f32 %v1134, %v1135
        %v1137 = vrot.slane %v1128, 4
        %v1138 = vadd.f32 %v1128, %v1137
        %v1139 = vrot.slane %v1138, 2
        %v1140 = vadd.f32 %v1138, %v1139
        %v1141 = vrot.slane %v1140, 1
        %v1142 = vadd.f32 %v1140, %v1141
        %v1143 = vrot.slane %v1129, 4
        %v1144 = vadd.f32 %v1129, %v1143
        %v1145 = vrot.slane %v1144, 2
        %v1146 = vadd.f32 %v1144, %v1145
        %v1147 = vrot.slane %v1146, 1
        %v1148 = vadd.f32 %v1146, %v1147
        %v1149 = vrot.slane %v1130, 4
        %v1150 = vadd.f32 %v1130, %v1149
        %v1151 = vrot.slane %v1150, 2
        %v1152 = vadd.f32 %v1150, %v1151
        %v1153 = vrot.slane %v1152, 1
        %v1154 = vadd.f32 %v1152, %v1153
        %v1155 = vmul.f32 %v1136, %v572
        %v1156 = vmul.f32 %v1142, %v572
        %v1157 = vmul.f32 %v1148, %v572
        %v1158 = vmul.f32 %v1154, %v572
        %v1159 = vmul.f32 %v1123, %v1123
        %v1160 = vmul.f32 %v1124, %v1124
        %v1161 = vmul.f32 %v1125, %v1125
        %v1162 = vmul.f32 %v1126, %v1126
        %v1163 = vsub.f32 %v1155, %v1159
        %v1164 = vsub.f32 %v1156, %v1160
        %v1165 = vsub.f32 %v1157, %v1161
        %v1166 = vsub.f32 %v1158, %v1162
        %v1167 = vadd.f32 %v1123, %v1061
        %v1168 = vadd.f32 %v1124, %v1066
        %v1169 = vadd.f32 %v1125, %v1071
        %v1170 = vadd.f32 %v1126, %v1076
        %v1171 = vld [vmem:[%s8] sm:$0x1]
        %v1172 = vadd.f32 %v1163, 1e-05
        %v1173 = vadd.f32 %v1164, 1e-05
        %v1174 = vadd.f32 %v1165, 1e-05
        %v1175 = vadd.f32 %v1166, 1e-05
        %v1176 = vrsqrt.pop %v1172
        %v1177 = vrsqrt.pop %v1173
        %v1178 = vrsqrt.pop %v1174
        %v1179 = vrsqrt.pop %v1175
        %v1180 = vmul.f32 %v1171, %v1176
        %v1181 = vmul.f32 %v1171, %v1177
        %v1182 = vmul.f32 %v1171, %v1178
        %v1183 = vmul.f32 %v1171, %v1179
        %v1184 = vld [vmem:[%s9] sm:$0x1]
        %v1185 = vmul.f32 %v1167, %v1180
        %v1186 = vmul.f32 %v1168, %v1181
        %v1187 = vmul.f32 %v1169, %v1182
        %v1188 = vmul.f32 %v1170, %v1183
        %v1189 = vsub.f32 %v1184, %v1185
        %v1190 = vsub.f32 %v1184, %v1186
        %v1191 = vsub.f32 %v1184, %v1187
        %v1192 = vsub.f32 %v1184, %v1188
        %v1197 = vlaneseq
        %v1198 = vshrl.u32 %v1197, 7
        %v1199 = vsub.s32 0, %v1198
        %v1200 = vrot.slane %v1180, %v1199
        %v1201 = vlaneseq
        %v1202 = vshrl.u32 %v1201, 7
        %v1203 = vsub.s32 0, %v1202
        %v1204 = vrot.slane %v1181, %v1203
        %v1205 = vlaneseq
        %v1206 = vshrl.u32 %v1205, 7
        %v1207 = vsub.s32 0, %v1206
        %v1208 = vrot.slane %v1182, %v1207
        %v1209 = vlaneseq
        %v1210 = vshrl.u32 %v1209, 7
        %v1211 = vsub.s32 0, %v1210
        %v1212 = vrot.slane %v1183, %v1211
        %v1217 = vmul.f32 %v1061, %v1200
        %v1218 = vmul.f32 %v1066, %v1204
        %v1219 = vmul.f32 %v1071, %v1208
        %v1220 = vmul.f32 %v1076, %v1212
        %v1225 = vlaneseq
        %v1226 = vshrl.u32 %v1225, 7
        %v1227 = vsub.s32 0, %v1226
        %v1228 = vrot.slane %v1189, %v1227
        %v1229 = vlaneseq
        %v1230 = vshrl.u32 %v1229, 7
        %v1231 = vsub.s32 0, %v1230
        %v1232 = vrot.slane %v1190, %v1231
        %v1233 = vlaneseq
        %v1234 = vshrl.u32 %v1233, 7
        %v1235 = vsub.s32 0, %v1234
        %v1236 = vrot.slane %v1191, %v1235
        %v1237 = vlaneseq
        %v1238 = vshrl.u32 %v1237, 7
        %v1239 = vsub.s32 0, %v1238
        %v1240 = vrot.slane %v1192, %v1239
        %v1245 = vadd.f32 %v1217, %v1228
        %v1246 = vadd.f32 %v1218, %v1232
        %v1247 = vadd.f32 %v1219, %v1236
        %v1248 = vadd.f32 %v1220, %v1240
        %v1249 = vtanh.pop %v1245
        %v1250 = vtanh.pop %v1246
        %v1251 = vtanh.pop %v1247
        %v1252 = vtanh.pop %v1248
        %vm1253 = vcmask 64512
        %1254 = vst.msk [vmem:[%s421] sm:$0xff] %vm1253, %v1249
        %1255 = vst.msk [vmem:[%s421 + $0x8] sm:$0xff] %vm1253, %v1250
        %1256 = vst.msk [vmem:[%s421 + $0x10] sm:$0xff] %vm1253, %v1251
        %1257 = vst.msk [vmem:[%s421 + $0x18] sm:$0xff] %vm1253, %v1252
        %s1258 = sand.u32 %s252, 1
        %s1259 = scalar_lea.sflag [#allocation4], %s1258
        %s1260 = sand.u32 %s252, 1
        %s1261 = smul.addr %s1260, 32
        %s1262 = scalar_lea.vmem [#allocation10], %s1261
        // Predicated region
        $region77: #{tpu_custom_call.1} parent=59 // pred_check
          %p1263 = pneg %p262
        $region78: #{tpu_custom_call.1} parent=59 // pred_check_branch
          %1265 = sbr.rel (%p1263) target = $region80
        $region79: #{tpu_custom_call.1} parent=59 // pred_region
          %s1266 = smul.u32 4, %s29
          %s1268 = ssub.s32 512, 512
          %1269 = vsyncadd %s1259, %s1268
          %s1270 = smul.addr %s1266, 128
          %s1271 = scalar_lea.hbm %s10, %s1270
          %s1272 = sshll.u32 %s1262, 4
          %s1273 = int_to_ptr.vmem [resolvable:$true] %s1272
          %1278 = dma.vmem_to_hbm [thread:$0]  %s1273, 512, %s1271, %s1259, 128, 128, 8
        $region80: #{tpu_custom_call.1} parent=59 // pred_fallthru
          _
      $region60: #{tpu_custom_call.1} parent=5 // pred_fallthru
        _
      %p1279 = scmp.le.s32.totalorder 2, %s24
      // Predicated region
      $region81: #{tpu_custom_call.1} parent=5 // pred_check
        %p1280 = pneg %p1279
      $region82: #{tpu_custom_call.1} parent=5 // pred_check_branch
        %1282 = sbr.rel (%p1280) target = $region84
      $region83: #{tpu_custom_call.1} parent=5 // pred_region
        %s1283 = ssub.s32 %s24, 2
        // Predicated region
        $region85: #{tpu_custom_call.1} parent=83 // pred_check
          %p1284 = pneg %p268
        $region86: #{tpu_custom_call.1} parent=83 // pred_check_branch
          %1286 = sbr.rel (%p1284) target = $region88
        $region87: #{tpu_custom_call.1} parent=83 // pred_region
          %s1287 = sand.u32 %s253, 1
          %s1288 = scalar_lea.sflag [#allocation4], %s1287
          %s1289 = sand.u32 %s253, 1
          %s1290 = smul.addr %s1289, 32
          %s1291 = scalar_lea.vmem [#allocation10], %s1290
          %1292 = dma.done %s1288, 512
        $region88: #{tpu_custom_call.1} parent=83 // pred_fallthru
          _
      $region84: #{tpu_custom_call.1} parent=5 // pred_fallthru
        _
    $region6: #{tpu_custom_call.1} parent=1 // loop_footer
      %s28 = sadd.s32 1, %s24
    $region7: #{tpu_custom_call.1} parent=1 // loop_footer_branch
      %23 = sbr.rel target = $region3
    $region8: #{tpu_custom_call.1} parent=1 // loop_exit
      _
    %1293 = vsyncpa [#allocation3], 1
    %s1294 = scalar_lea.sflag [#allocation3], 1
    %1295 = vsyncpa %s1294, 1
    %1296 = vsyncpa [#allocation6], 1
    %1297 = vsyncpa [#allocation9], 1
    %1298 = vsyncpa [#allocation4], 1
    %s1299 = scalar_lea.sflag [#allocation4], 1
    %1300 = vsyncpa %s1299, 1

</llo_original>
